<compile_context>
chip_gen: v6e
topology: v6e:2x2x1
jax: 0.10.0
libtpu: 0.0.40
codegen_flags: <defaults>
</compile_context>

<pallas_src>
import functools

import jax
import jax.numpy as jnp
from jax.experimental import pallas as pl
from jax.experimental.pallas import tpu as pltpu


# ----------------------------- configuration --------------------------------
DIM       = 128
DIM_HEAD  = 64
HEADS     = 2
DIM_INNER = DIM_HEAD * HEADS          # 128
SOFTCLAMP = 50.0
SCALE     = DIM_HEAD ** -0.5
RMS_EPS   = float(jnp.finfo(jnp.float32).eps)   # torch nn.RMSNorm(eps=None)

NEG_MAX   = float(jnp.finfo(jnp.float32).max)   # reference masked_fill value
MASK_BIAS = -1e4                                # additive mask (|s| <= 50 after clamp)
MXU_DTYPE = jnp.bfloat16                        # MXU input dtype


# ------------------------------- kernel --------------------------------------
def attention_kernel(bias_ref, x_ref, wqkv_m_ref, wqkv_a_ref,
                     wout_m_ref, wout_a_ref, out_ref,
                     *, heads, dim_head, m_rows):
    """One grid step == one packed block: rows [0:m_rows) are the multimodal
    rows of the block's batch elements, rows [m_rows:) are the action rows plus
    zero padding.  bias is the block-diagonal + hybrid-causal additive mask."""
    di = heads * dim_head

    # ---- multimodal stream: RMSNorm (gamma folded into wqkv_m) + qkv proj ----
    xm  = x_ref[:m_rows, :].astype(jnp.float32)
    var = jnp.mean(xm * xm, axis=-1, keepdims=True)
    xm  = xm * jax.lax.rsqrt(var + RMS_EPS)
    qkv_m = jnp.dot(xm.astype(MXU_DTYPE), wqkv_m_ref[...],
                    preferred_element_type=jnp.float32)          # (m_rows, 3*di)

    # ---- action (+ pad) stream: qkv proj, no norm ----
    xa = x_ref[m_rows:, :].astype(MXU_DTYPE)
    qkv_a = jnp.dot(xa, wqkv_a_ref[...],
                    preferred_element_type=jnp.float32)          # (R-m_rows, 3*di)

    qkv  = jnp.concatenate([qkv_m, qkv_a], axis=0)               # (R, 3*di)
    bias = bias_ref[...]                                         # (R, R)

    # ---- attention: one packed (R, R) score matrix per head ----
    # scale * 1/softclamp pre-folded into the q columns; constant-max softmax:
    # unmasked s in [-50, 50] so exp(s-50) <= 1; masked s <= -1e4+50 underflows
    # exp to exactly 0 (matches the reference masked_fill).
    per_head = []
    for h in range(heads):
        lo, hi = h * dim_head, (h + 1) * dim_head
        qh = qkv[:, lo:hi].astype(MXU_DTYPE)
        kh = qkv[:, di + lo:di + hi].astype(MXU_DTYPE)
        vh = qkv[:, 2 * di + lo:2 * di + hi].astype(MXU_DTYPE)

        s = jnp.einsum('id,jd->ij', qh, kh,
                       preferred_element_type=jnp.float32)       # (R, R)
        s = jnp.tanh(s) * SOFTCLAMP + bias
        e = jnp.exp(s - SOFTCLAMP)                               # e <= 1
        l = jnp.sum(e, axis=-1, keepdims=True)
        pv = jnp.dot(e.astype(MXU_DTYPE), vh,
                     preferred_element_type=jnp.float32)         # (R, dim_head)
        per_head.append(pv * pl.reciprocal(l, approx=True))      # deferred norm

    o = jnp.concatenate(per_head, axis=-1).astype(MXU_DTYPE)     # (R, di)

    # ---- output projections, hoisted out of the head loop (full K on MXU) ----
    om = jnp.dot(o[:m_rows, :], wout_m_ref[...],
                 preferred_element_type=jnp.float32)
    oa = jnp.dot(o[m_rows:, :], wout_a_ref[...],
                 preferred_element_type=jnp.float32)
    out_ref[:m_rows, :] = om.astype(out_ref.dtype)
    out_ref[m_rows:, :] = oa.astype(out_ref.dtype)


# ------------------------------- wrapper --------------------------------------
def _round_up(x, m):
    return (x + m - 1) // m * m


def _pick_block_b(batch, n_total, dim, vmem_budget=24 * 1024 * 1024):
    """Largest block_b dividing batch whose packed (lane-aligned) block fits a
    conservative VMEM budget (under every chip's default scoped limit).  Bigger
    blocks amortize per-step pipeline overhead and fill the MXU / vreg lanes;
    on v7x one could cap this to keep >= 2 grid steps for its 2 TensorCores."""
    best = 1
    for b in range(1, batch + 1):
        if batch % b:
            continue
        r = _round_up(b * n_total, 128)
        est = (r * r * 4                      # resident additive bias
               + 2 * r * r * 4                # s / e f32 temporaries
               + r * 3 * DIM_INNER * 4        # qkv activations
               + 4 * r * dim * 4              # double-buffered in/out blocks
               + (6 * dim * DIM_INNER + 2 * DIM_INNER * dim) * 2)  # bf16 weights
        if est <= vmem_budget:
            best = b
    return best


def attention_forward(multimodal_seq, actions, params, *, block_b=None):
    """multimodal_seq: (B, n_m, DIM), actions: (B, n_a, DIM) -> (mout, aout)."""
    rmsw, wqkv, wout, waqkv, waout = params
    B, n_m, dim = multimodal_seq.shape
    _, n_a, _ = actions.shape
    assert dim == DIM
    N = n_m + n_a

    if block_b is None:
        block_b = _pick_block_b(B, N, dim)
    assert B % block_b == 0
    G = B // block_b
    m_rows = block_b * n_m
    a_rows = block_b * n_a
    R = _round_up(m_rows + a_rows, 128)            # lane-aligned packed rows

    # --- fold RMSNorm gamma + attention scale + 1/softclamp into qkv weights ---
    def fold_q(w):                                 # scale only the q columns
        return jnp.concatenate([w[:, :DIM_INNER] * (SCALE / SOFTCLAMP),
                                w[:, DIM_INNER:]], axis=1)

    wqkv_m = fold_q(rmsw[:, None] * wqkv).astype(MXU_DTYPE)     # (DIM, 3*DIM_INNER)
    wqkv_a = fold_q(waqkv).astype(MXU_DTYPE)
    wout_m = wout.astype(MXU_DTYPE)                              # (DIM_INNER, DIM)
    wout_a = waout.astype(MXU_DTYPE)

    # --- reordered packing: [mm rows ; action rows ; zero pad] per block ---
    xm = multimodal_seq.reshape(G, m_rows, dim)
    xa = actions.reshape(G, a_rows, dim)
    pad = jnp.zeros((G, R - m_rows - a_rows, dim), multimodal_seq.dtype)
    x_pack = jnp.concatenate([xm, xa, pad], axis=1).reshape(G * R, dim)

    # --- block-invariant additive attention bias (resident in VMEM) ---
    idx = jnp.arange(R)
    is_mm = idx < m_rows
    is_act = (idx >= m_rows) & (idx < m_rows + a_rows)
    b_id = jnp.where(is_mm, idx // max(n_m, 1),
                     jnp.where(is_act, (idx - m_rows) // max(n_a, 1), -1 - idx))
    pos = jnp.where(is_mm, idx % max(n_m, 1),
                    jnp.where(is_act, n_m + (idx - m_rows) % max(n_a, 1), 0))
    same_b = (b_id[:, None] == b_id[None, :]) & (b_id[:, None] >= 0)
    hidden = (pos[None, :] > pos[:, None]) & (pos[None, :] < n_m)
    visible = (same_b & jnp.logical_not(hidden)) | (idx[:, None] == idx[None, :])
    bias = jnp.where(visible, 0.0, MASK_BIAS).astype(jnp.float32)   # (R, R)

    kernel = functools.partial(attention_kernel, heads=HEADS,
                               dim_head=DIM_HEAD, m_rows=m_rows)

    grid_spec = pltpu.PrefetchScalarGridSpec(
        num_scalar_prefetch=0,
        grid=(G,),
        in_specs=[
            pl.BlockSpec((R, R), lambda g: (0, 0)),              # bias (resident)
            pl.BlockSpec((R, dim), lambda g: (g, 0)),            # packed inputs
            pl.BlockSpec(wqkv_m.shape, lambda g: (0, 0)),        # mm qkv weight
            pl.BlockSpec(wqkv_a.shape, lambda g: (0, 0)),        # action qkv weight
            pl.BlockSpec(wout_m.shape, lambda g: (0, 0)),        # mm out weight
            pl.BlockSpec(wout_a.shape, lambda g: (0, 0)),        # action out weight
        ],
        out_specs=pl.BlockSpec((R, dim), lambda g: (g, 0)),      # lane-dense slab
    )

    out_pack = pl.pallas_call(
        kernel,
        out_shape=jax.ShapeDtypeStruct((G * R, dim), jnp.float32),
        grid_spec=grid_spec,
        compiler_params=pltpu.CompilerParams(
            dimension_semantics=("parallel",)),
    )(bias, x_pack, wqkv_m, wqkv_a, wout_m, wout_a)

    # NOTE: module API returns two tensors, so one slab split is unavoidable;
    # callers wanting the packed (B, N, dim) layout should consume out_pack.
    out = out_pack.reshape(G, R, dim)
    mout = out[:, :m_rows].reshape(B, n_m, dim)
    aout = out[:, m_rows:m_rows + a_rows].reshape(B, n_a, dim)
    return mout, aout


# ----------------------------- JAX reference ----------------------------------
def attention_reference(multimodal_seq, actions, params):
    """Pure-JAX f32 mirror of the PyTorch module's default forward path."""
    rmsw, wqkv, wout, waqkv, waout = params
    B, n_m, _ = multimodal_seq.shape
    _, n_a, _ = actions.shape
    N = n_m + n_a

    var = jnp.mean(multimodal_seq ** 2, axis=-1, keepdims=True)
    ms = multimodal_seq * jax.lax.rsqrt(var + RMS_EPS) * rmsw

    qkv_m = ms @ wqkv
    qkv_a = actions @ waqkv
    mq, mk, mv = jnp.split(qkv_m, 3, axis=-1)
    aq, ak, av = jnp.split(qkv_a, 3, axis=-1)

    def sh(t):  # (B, n, h*d) -> (B, h, n, d)
        return jnp.transpose(t.reshape(t.shape[0], t.shape[1], HEADS, DIM_HEAD),
                             (0, 2, 1, 3))

    q = jnp.concatenate([sh(mq), sh(aq)], axis=2) * SCALE
    k = jnp.concatenate([sh(mk), sh(ak)], axis=2)
    v = jnp.concatenate([sh(mv), sh(av)], axis=2)

    sim = jnp.einsum('bhid,bhjd->bhij', q, k)
    sim = jnp.tanh(sim / SOFTCLAMP) * SOFTCLAMP
    row = jnp.arange(N)[:, None]
    col = jnp.arange(N)[None, :]
    mask = (col > row) & (col < n_m)
    sim = jnp.where(mask, -NEG_MAX, sim)
    attn = jax.nn.softmax(sim, axis=-1)
    out = jnp.einsum('bhij,bhjd->bhid', attn, v)
    out = jnp.transpose(out, (0, 2, 1, 3)).reshape(B, N, DIM_INNER)
    return out[:, :n_m] @ wout, out[:, n_m:] @ waout


# --------------------------------- main ----------------------------------------
if __name__ == "__main__":
    key = jax.random.PRNGKey(0)
    k_ms, k_act, k_g, k_w1, k_w2, k_w3, k_w4 = jax.random.split(key, 7)

    B, n_m, n_a = 8, 8, 4

    multimodal_seq = jax.random.normal(k_ms, (B, n_m, DIM), dtype=jnp.float32)
    actions = jax.random.normal(k_act, (B, n_a, DIM), dtype=jnp.float32)

    # parameters (shapes from the module's __init__); linear weights stored
    # pre-transposed as (in_features, out_features)
    rmsw  = 1.0 + 0.1 * jax.random.normal(k_g, (DIM,), jnp.float32)               # nn.RMSNorm weight
    wqkv  = jax.random.normal(k_w1, (DIM, 3 * DIM_INNER), jnp.float32) * 0.05      # to_qkv
    wout  = jax.random.normal(k_w2, (DIM_INNER, DIM), jnp.float32) * 0.05          # to_out
    waqkv = jax.random.normal(k_w3, (DIM, 3 * DIM_INNER), jnp.float32) * 0.05      # to_actions_qkv
    waout = jax.random.normal(k_w4, (DIM_INNER, DIM), jnp.float32) * 0.05          # to_actions_out
    params = (rmsw, wqkv, wout, waqkv, waout)

    mout, aout = attention_forward(multimodal_seq, actions, params)
    jax.block_until_ready((mout, aout))

    mref, aref = attention_reference(multimodal_seq, actions, params)
    # tolerance accounts for bf16 weights / MXU inputs + approximate reciprocal
    assert jnp.allclose(mout, mref, atol=1e-2, rtol=2e-2), "multimodal output mismatch"
    assert jnp.allclose(aout, aref, atol=1e-2, rtol=2e-2), "actions output mismatch"

    print("KERNEL_OK")
</pallas_src>

<mosaic_0001>
module attributes {stable_mosaic.version = 11 : i64} {
  func.func @attention_kernel(%arg0: i32, %arg1: memref<128x128xf32, #tpu.memory_space<vmem>>, %arg2: memref<128x128xf32, #tpu.memory_space<vmem>>, %arg3: memref<128x384xbf16, #tpu.memory_space<vmem>>, %arg4: memref<128x384xbf16, #tpu.memory_space<vmem>>, %arg5: memref<128x128xbf16, #tpu.memory_space<vmem>>, %arg6: memref<128x128xbf16, #tpu.memory_space<vmem>>, %arg7: memref<128x128xf32, #tpu.memory_space<vmem>>) attributes {dimension_semantics = [#tpu.dimension_semantics<parallel>], iteration_bounds = array<i64: 1>, scalar_prefetch = 0 : i64, scratch_operands = 0 : i64, tpu.core_type = #tpu.core_type<tc>, window_params = [{pipeline_mode = #tpu.pipeline_mode<synchronous>, transform_indices = @transform_0, window_bounds = array<i64: 128, 128>}, {transform_indices = @transform_1, window_bounds = array<i64: 128, 128>}, {pipeline_mode = #tpu.pipeline_mode<synchronous>, transform_indices = @transform_2, window_bounds = array<i64: 128, 384>}, {pipeline_mode = #tpu.pipeline_mode<synchronous>, transform_indices = @transform_3, window_bounds = array<i64: 128, 384>}, {pipeline_mode = #tpu.pipeline_mode<synchronous>, transform_indices = @transform_4, window_bounds = array<i64: 128, 128>}, {pipeline_mode = #tpu.pipeline_mode<synchronous>, transform_indices = @transform_5, window_bounds = array<i64: 128, 128>}, {transform_indices = @transform_6, window_bounds = array<i64: 128, 128>}]} {
    %c0 = arith.constant 0 : index
    %c0_0 = arith.constant 0 : index
    %0 = vector.load %arg2[%c0, %c0_0] : memref<128x128xf32, #tpu.memory_space<vmem>>, vector<64x128xf32>
    %1 = arith.mulf %0, %0 : vector<64x128xf32>
    %cst = arith.constant dense<0.000000e+00> : vector<64xf32>
    %2 = vector.multi_reduction <add>, %1, %cst [1] : vector<64x128xf32> to vector<64xf32>
    %3 = vector.shape_cast %2 : vector<64xf32> to vector<64x1xf32>
    %cst_1 = arith.constant 1.280000e+02 : f32
    %4 = vector.broadcast %cst_1 : f32 to vector<64x1xf32>
    %5 = arith.divf %3, %4 : vector<64x1xf32>
    %cst_2 = arith.constant 1.1920929E-7 : f32
    %6 = vector.broadcast %cst_2 : f32 to vector<64x1xf32>
    %7 = arith.addf %5, %6 : vector<64x1xf32>
    %8 = math.rsqrt %7 : vector<64x1xf32>
    %9 = vector.broadcast %8 : vector<64x1xf32> to vector<64x128xf32>
    %10 = arith.mulf %0, %9 : vector<64x128xf32>
    %11 = arith.truncf %10 : vector<64x128xf32> to vector<64x128xbf16>
    %c0_3 = arith.constant 0 : index
    %c0_4 = arith.constant 0 : index
    %12 = vector.load %arg3[%c0_3, %c0_4] : memref<128x384xbf16, #tpu.memory_space<vmem>>, vector<128x384xbf16>
    %cst_5 = arith.constant dense<0.000000e+00> : vector<64x384xf32>
    %13 = tpu.matmul %11, %12, %cst_5 {dimension_numbers = #tpu.dot_dimension_numbers<[1], [0], [0], [1], [0, 0, 1, 1], [], []>} : vector<64x128xbf16>, vector<128x384xbf16>, vector<64x384xf32> -> vector<64x384xf32>
    %c64 = arith.constant 64 : index
    %c0_6 = arith.constant 0 : index
    %14 = vector.load %arg2[%c64, %c0_6] : memref<128x128xf32, #tpu.memory_space<vmem>>, vector<64x128xf32>
    %15 = arith.truncf %14 : vector<64x128xf32> to vector<64x128xbf16>
    %c0_7 = arith.constant 0 : index
    %c0_8 = arith.constant 0 : index
    %16 = vector.load %arg4[%c0_7, %c0_8] : memref<128x384xbf16, #tpu.memory_space<vmem>>, vector<128x384xbf16>
    %cst_9 = arith.constant dense<0.000000e+00> : vector<64x384xf32>
    %17 = tpu.matmul %15, %16, %cst_9 {dimension_numbers = #tpu.dot_dimension_numbers<[1], [0], [0], [1], [0, 0, 1, 1], [], []>} : vector<64x128xbf16>, vector<128x384xbf16>, vector<64x384xf32> -> vector<64x384xf32>
    %18 = tpu.concatenate %13, %17 in 0 : vector<64x384xf32>, vector<64x384xf32> -> vector<128x384xf32>
    %c0_10 = arith.constant 0 : index
    %c0_11 = arith.constant 0 : index
    %19 = vector.load %arg1[%c0_10, %c0_11] : memref<128x128xf32, #tpu.memory_space<vmem>>, vector<128x128xf32>
    %20 = vector.extract_strided_slice %18 {offsets = [0, 0], sizes = [128, 64], strides = [1, 1]} : vector<128x384xf32> to vector<128x64xf32>
    %21 = arith.truncf %20 : vector<128x64xf32> to vector<128x64xbf16>
    %22 = vector.extract_strided_slice %18 {offsets = [0, 128], sizes = [128, 64], strides = [1, 1]} : vector<128x384xf32> to vector<128x64xf32>
    %23 = arith.truncf %22 : vector<128x64xf32> to vector<128x64xbf16>
    %24 = vector.extract_strided_slice %18 {offsets = [0, 256], sizes = [128, 64], strides = [1, 1]} : vector<128x384xf32> to vector<128x64xf32>
    %25 = arith.truncf %24 : vector<128x64xf32> to vector<128x64xbf16>
    "tpu.trace_start"() <{level = 10 : i32, message = "id,jd->ij"}> : () -> ()
    %cst_12 = arith.constant dense<0.000000e+00> : vector<128x128xf32>
    %26 = tpu.matmul %21, %23, %cst_12 {dimension_numbers = #tpu.dot_dimension_numbers<[1], [1], [0], [0], [0, 0, 1, 0], [], []>} : vector<128x64xbf16>, vector<128x64xbf16>, vector<128x128xf32> -> vector<128x128xf32>
    "tpu.trace_stop"() : () -> ()
    %27 = math.tanh %26 : vector<128x128xf32>
    %cst_13 = arith.constant 5.000000e+01 : f32
    %28 = vector.broadcast %cst_13 : f32 to vector<128x128xf32>
    %29 = arith.mulf %27, %28 : vector<128x128xf32>
    %30 = arith.addf %29, %19 : vector<128x128xf32>
    %cst_14 = arith.constant 5.000000e+01 : f32
    %31 = vector.broadcast %cst_14 : f32 to vector<128x128xf32>
    %32 = arith.subf %30, %31 : vector<128x128xf32>
    %33 = math.exp %32 : vector<128x128xf32>
    %cst_15 = arith.constant dense<0.000000e+00> : vector<128xf32>
    %34 = vector.multi_reduction <add>, %33, %cst_15 [1] : vector<128x128xf32> to vector<128xf32>
    %35 = vector.shape_cast %34 : vector<128xf32> to vector<128x1xf32>
    %36 = arith.truncf %33 : vector<128x128xf32> to vector<128x128xbf16>
    %cst_16 = arith.constant dense<0.000000e+00> : vector<128x64xf32>
    %37 = tpu.matmul %36, %25, %cst_16 {dimension_numbers = #tpu.dot_dimension_numbers<[1], [0], [0], [1], [0, 0, 1, 1], [], []>} : vector<128x128xbf16>, vector<128x64xbf16>, vector<128x64xf32> -> vector<128x64xf32>
    %38 = tpu.reciprocal %35 {approx = true} : vector<128x1xf32> -> vector<128x1xf32>
    %39 = vector.broadcast %38 : vector<128x1xf32> to vector<128x64xf32>
    %40 = arith.mulf %37, %39 : vector<128x64xf32>
    %41 = vector.extract_strided_slice %18 {offsets = [0, 64], sizes = [128, 64], strides = [1, 1]} : vector<128x384xf32> to vector<128x64xf32>
    %42 = arith.truncf %41 : vector<128x64xf32> to vector<128x64xbf16>
    %43 = vector.extract_strided_slice %18 {offsets = [0, 192], sizes = [128, 64], strides = [1, 1]} : vector<128x384xf32> to vector<128x64xf32>
    %44 = arith.truncf %43 : vector<128x64xf32> to vector<128x64xbf16>
    %45 = vector.extract_strided_slice %18 {offsets = [0, 320], sizes = [128, 64], strides = [1, 1]} : vector<128x384xf32> to vector<128x64xf32>
    %46 = arith.truncf %45 : vector<128x64xf32> to vector<128x64xbf16>
    "tpu.trace_start"() <{level = 10 : i32, message = "id,jd->ij"}> : () -> ()
    %cst_17 = arith.constant dense<0.000000e+00> : vector<128x128xf32>
    %47 = tpu.matmul %42, %44, %cst_17 {dimension_numbers = #tpu.dot_dimension_numbers<[1], [1], [0], [0], [0, 0, 1, 0], [], []>} : vector<128x64xbf16>, vector<128x64xbf16>, vector<128x128xf32> -> vector<128x128xf32>
    "tpu.trace_stop"() : () -> ()
    %48 = math.tanh %47 : vector<128x128xf32>
    %cst_18 = arith.constant 5.000000e+01 : f32
    %49 = vector.broadcast %cst_18 : f32 to vector<128x128xf32>
    %50 = arith.mulf %48, %49 : vector<128x128xf32>
    %51 = arith.addf %50, %19 : vector<128x128xf32>
    %cst_19 = arith.constant 5.000000e+01 : f32
    %52 = vector.broadcast %cst_19 : f32 to vector<128x128xf32>
    %53 = arith.subf %51, %52 : vector<128x128xf32>
    %54 = math.exp %53 : vector<128x128xf32>
    %cst_20 = arith.constant dense<0.000000e+00> : vector<128xf32>
    %55 = vector.multi_reduction <add>, %54, %cst_20 [1] : vector<128x128xf32> to vector<128xf32>
    %56 = vector.shape_cast %55 : vector<128xf32> to vector<128x1xf32>
    %57 = arith.truncf %54 : vector<128x128xf32> to vector<128x128xbf16>
    %cst_21 = arith.constant dense<0.000000e+00> : vector<128x64xf32>
    %58 = tpu.matmul %57, %46, %cst_21 {dimension_numbers = #tpu.dot_dimension_numbers<[1], [0], [0], [1], [0, 0, 1, 1], [], []>} : vector<128x128xbf16>, vector<128x64xbf16>, vector<128x64xf32> -> vector<128x64xf32>
    %59 = tpu.reciprocal %56 {approx = true} : vector<128x1xf32> -> vector<128x1xf32>
    %60 = vector.broadcast %59 : vector<128x1xf32> to vector<128x64xf32>
    %61 = arith.mulf %58, %60 : vector<128x64xf32>
    %62 = tpu.concatenate %40, %61 in 1 : vector<128x64xf32>, vector<128x64xf32> -> vector<128x128xf32>
    %63 = arith.truncf %62 : vector<128x128xf32> to vector<128x128xbf16>
    %64 = vector.extract_strided_slice %63 {offsets = [0, 0], sizes = [64, 128], strides = [1, 1]} : vector<128x128xbf16> to vector<64x128xbf16>
    %c0_22 = arith.constant 0 : index
    %c0_23 = arith.constant 0 : index
    %65 = vector.load %arg5[%c0_22, %c0_23] : memref<128x128xbf16, #tpu.memory_space<vmem>>, vector<128x128xbf16>
    %cst_24 = arith.constant dense<0.000000e+00> : vector<64x128xf32>
    %66 = tpu.matmul %64, %65, %cst_24 {dimension_numbers = #tpu.dot_dimension_numbers<[1], [0], [0], [1], [0, 0, 1, 1], [], []>} : vector<64x128xbf16>, vector<128x128xbf16>, vector<64x128xf32> -> vector<64x128xf32>
    %67 = vector.extract_strided_slice %63 {offsets = [64, 0], sizes = [64, 128], strides = [1, 1]} : vector<128x128xbf16> to vector<64x128xbf16>
    %c0_25 = arith.constant 0 : index
    %c0_26 = arith.constant 0 : index
    %68 = vector.load %arg6[%c0_25, %c0_26] : memref<128x128xbf16, #tpu.memory_space<vmem>>, vector<128x128xbf16>
    %cst_27 = arith.constant dense<0.000000e+00> : vector<64x128xf32>
    %69 = tpu.matmul %67, %68, %cst_27 {dimension_numbers = #tpu.dot_dimension_numbers<[1], [0], [0], [1], [0, 0, 1, 1], [], []>} : vector<64x128xbf16>, vector<128x128xbf16>, vector<64x128xf32> -> vector<64x128xf32>
    %c0_28 = arith.constant 0 : index
    %c0_29 = arith.constant 0 : index
    %70 = vector.load %arg7[%c0_28, %c0_29] : memref<128x128xf32, #tpu.memory_space<vmem>>, vector<64x128xf32>
    tpu.vector_store %arg7[%c0_28, %c0_29], %66 {strides = array<i32>} : memref<128x128xf32, #tpu.memory_space<vmem>>, vector<64x128xf32>,
    %c64_30 = arith.constant 64 : index
    %c0_31 = arith.constant 0 : index
    %71 = vector.load %arg7[%c64_30, %c0_31] : memref<128x128xf32, #tpu.memory_space<vmem>>, vector<64x128xf32>
    tpu.vector_store %arg7[%c64_30, %c0_31], %69 {strides = array<i32>} : memref<128x128xf32, #tpu.memory_space<vmem>>, vector<64x128xf32>,
    return
  }
  func.func @transform_0(%arg0: i32) -> (i32, i32) {
    %c0_i32 = arith.constant 0 : i32
    %c0_i32_0 = arith.constant 0 : i32
    %c0_i32_1 = arith.constant 0 : i32
    return %c0_i32, %c0_i32_0 : i32, i32
  }
  func.func @transform_1(%arg0: i32) -> (i32, i32) {
    %c0_i32 = arith.constant 0 : i32
    %c0_i32_0 = arith.constant 0 : i32
    return %arg0, %c0_i32 : i32, i32
  }
  func.func @transform_2(%arg0: i32) -> (i32, i32) {
    %c0_i32 = arith.constant 0 : i32
    %c0_i32_0 = arith.constant 0 : i32
    %c0_i32_1 = arith.constant 0 : i32
    return %c0_i32, %c0_i32_0 : i32, i32
  }
  func.func @transform_3(%arg0: i32) -> (i32, i32) {
    %c0_i32 = arith.constant 0 : i32
    %c0_i32_0 = arith.constant 0 : i32
    %c0_i32_1 = arith.constant 0 : i32
    return %c0_i32, %c0_i32_0 : i32, i32
  }
  func.func @transform_4(%arg0: i32) -> (i32, i32) {
    %c0_i32 = arith.constant 0 : i32
    %c0_i32_0 = arith.constant 0 : i32
    %c0_i32_1 = arith.constant 0 : i32
    return %c0_i32, %c0_i32_0 : i32, i32
  }
  func.func @transform_5(%arg0: i32) -> (i32, i32) {
    %c0_i32 = arith.constant 0 : i32
    %c0_i32_0 = arith.constant 0 : i32
    %c0_i32_1 = arith.constant 0 : i32
    return %c0_i32, %c0_i32_0 : i32, i32
  }
  func.func @transform_6(%arg0: i32) -> (i32, i32) {
    %c0_i32 = arith.constant 0 : i32
    %c0_i32_0 = arith.constant 0 : i32
    return %arg0, %c0_i32 : i32, i32
  }
}

</mosaic_0001>

<llo_original>
// kernel: tpu_custom_call.1
$region0: #{tpu_custom_call.1}
  #allocation0 [shape = 'u32[]', space=smem, size = 0x4, offset = 0x4, fixed_abs, tag = 'smem constant byte address 0x4 - core index']
  #allocation1 [shape = 'u32[144,128]{1,0:T(1,128)}', space=vmem, size = 0x12000, scoped, tag = 'internal scratch']
  %s0 = inlined_call_operand.hbm [shape: f32[128,128], index: 0, kind: input, shape index: {}]
  %s1 = inlined_call_operand.hbm [shape: f32[128,128], index: 1, kind: input, shape index: {}]
  %s2 = inlined_call_operand.hbm [shape: bf16[128,384], index: 2, kind: input, shape index: {}]
  %s3 = inlined_call_operand.hbm [shape: bf16[128,384], index: 3, kind: input, shape index: {}]
  %s4 = inlined_call_operand.hbm [shape: bf16[128,128], index: 4, kind: input, shape index: {}]
  %s5 = inlined_call_operand.hbm [shape: bf16[128,128], index: 5, kind: input, shape index: {}]
  %s6 = inlined_call_operand.hbm [shape: f32[128,128], index: 6, kind: output, shape index: {}]
  %s7 = sld [smem:[#allocation0]]
  $region58: #{tpu_custom_call.1} parent=0
    _
  %s9 = ssub.s32 1, %s7
  %s10 = scalar_select 0, %s9, %s7
  $region1: #{tpu_custom_call.1} parent=0
    #allocation2 [shape = 'u8[65536]{0}', space=vmem, size = 0x10000, scoped, tag = 'input window, operand 0, single buffered']
    #allocation3 [shape = 's32[1]{0}', space=sflag, size = 0x4, scoped, tag = 'scoped memory for tpu_custom_call.1']
    #allocation4 [shape = 's32[1]{0}', space=sflag, size = 0x4, scoped, tag = 'scoped memory for tpu_custom_call.1']
    #allocation5 [shape = 'u8[65536]{0}', space=vmem, size = 0x10000, scoped, tag = 'input window, operand 1, single buffered']
    #allocation6 [shape = 's32[1]{0}', space=sflag, size = 0x4, scoped, tag = 'scoped memory for tpu_custom_call.1']
    #allocation7 [shape = 'u8[98304]{0}', space=vmem, size = 0x18000, scoped, tag = 'input window, operand 2, single buffered']
    #allocation8 [shape = 'u8[98304]{0}', space=vmem, size = 0x18000, scoped, tag = 'input window, operand 3, single buffered']
    #allocation9 [shape = 's32[1]{0}', space=sflag, size = 0x4, scoped, tag = 'scoped memory for tpu_custom_call.1']
    #allocation10 [shape = 'u8[32768]{0}', space=vmem, size = 0x8000, scoped, tag = 'input window, operand 4, single buffered']
    #allocation11 [shape = 'u8[32768]{0}', space=vmem, size = 0x8000, scoped, tag = 'input window, operand 5, single buffered']
    #allocation12 [shape = 's32[1]{0}', space=sflag, size = 0x4, scoped, tag = 'scoped memory for tpu_custom_call.1']
    #allocation13 [shape = 'u8[65536]{0}', space=vmem, size = 0x10000, scoped, tag = 'output window, operand 0, single buffered']
    %11 = vsyncpa [#allocation3], 0
    %12 = vsyncpa [#allocation6], 0
    %13 = vsyncpa [#allocation9], 0
    %14 = vsyncpa [#allocation12], 0
    %15 = vsyncpa [#allocation4], 0
    // Predicated region
    $region2: #{tpu_custom_call.1} parent=1 // pred_check
      _
    $region3: #{tpu_custom_call.1} parent=1 // pred_check_branch
      %17 = sbr.rel (0) target = $region5
    $region4: #{tpu_custom_call.1} parent=1 // pred_region
      %s19 = ssub.s32 2048, 2048
      %20 = vsyncadd [#allocation3], %s19
      %s21 = sshll.u32 [#allocation2], 4
      %s22 = int_to_ptr.vmem [resolvable:$true] %s21
      %27 = dma.hbm_to_vmem [thread:$0]  %s0, 2048, %s22, [#allocation3], 128, 128, 8
    $region5: #{tpu_custom_call.1} parent=1 // pred_fallthru
      _
    // Predicated region
    $region6: #{tpu_custom_call.1} parent=1 // pred_check
      _
    $region7: #{tpu_custom_call.1} parent=1 // pred_check_branch
      %29 = sbr.rel (0) target = $region9
    $region8: #{tpu_custom_call.1} parent=1 // pred_region
      %s31 = ssub.s32 2048, 2048
      %32 = vsyncadd [#allocation6], %s31
      %s33 = sshll.u32 [#allocation5], 4
      %s34 = int_to_ptr.vmem [resolvable:$true] %s33
      %39 = dma.hbm_to_vmem [thread:$0]  %s1, 2048, %s34, [#allocation6], 128, 128, 8
    $region9: #{tpu_custom_call.1} parent=1 // pred_fallthru
      _
    // Predicated region
    $region10: #{tpu_custom_call.1} parent=1 // pred_check
      _
    $region11: #{tpu_custom_call.1} parent=1 // pred_check_branch
      %41 = sbr.rel (0) target = $region13
    $region12: #{tpu_custom_call.1} parent=1 // pred_region
      %s43 = ssub.s32 3072, 3072
      %44 = vsyncadd [#allocation6], %s43
      %s45 = sshll.u32 [#allocation7], 4
      %s46 = int_to_ptr.vmem [resolvable:$true] %s45
      %51 = dma.hbm_to_vmem [thread:$0]  %s2, 3072, %s46, [#allocation6], 192, 192, 12
    $region13: #{tpu_custom_call.1} parent=1 // pred_fallthru
      _
    // Predicated region
    $region14: #{tpu_custom_call.1} parent=1 // pred_check
      _
    $region15: #{tpu_custom_call.1} parent=1 // pred_check_branch
      %53 = sbr.rel (0) target = $region17
    $region16: #{tpu_custom_call.1} parent=1 // pred_region
      %s55 = ssub.s32 3072, 3072
      %56 = vsyncadd [#allocation9], %s55
      %s57 = sshll.u32 [#allocation8], 4
      %s58 = int_to_ptr.vmem [resolvable:$true] %s57
      %63 = dma.hbm_to_vmem [thread:$0]  %s3, 3072, %s58, [#allocation9], 192, 192, 12
    $region17: #{tpu_custom_call.1} parent=1 // pred_fallthru
      _
    // Predicated region
    $region18: #{tpu_custom_call.1} parent=1 // pred_check
      _
    $region19: #{tpu_custom_call.1} parent=1 // pred_check_branch
      %65 = sbr.rel (0) target = $region21
    $region20: #{tpu_custom_call.1} parent=1 // pred_region
      %s67 = ssub.s32 1024, 1024
      %68 = vsyncadd [#allocation9], %s67
      %s69 = sshll.u32 [#allocation10], 4
      %s70 = int_to_ptr.vmem [resolvable:$true] %s69
      %75 = dma.hbm_to_vmem [thread:$0]  %s4, 1024, %s70, [#allocation9], 64, 64, 4
    $region21: #{tpu_custom_call.1} parent=1 // pred_fallthru
      _
    // Predicated region
    $region22: #{tpu_custom_call.1} parent=1 // pred_check
      _
    $region23: #{tpu_custom_call.1} parent=1 // pred_check_branch
      %77 = sbr.rel (0) target = $region25
    $region24: #{tpu_custom_call.1} parent=1 // pred_region
      %s79 = ssub.s32 1024, 1024
      %80 = vsyncadd [#allocation12], %s79
      %s81 = sshll.u32 [#allocation11], 4
      %s82 = int_to_ptr.vmem [resolvable:$true] %s81
      %87 = dma.hbm_to_vmem [thread:$0]  %s5, 1024, %s82, [#allocation12], 64, 64, 4
    $region25: #{tpu_custom_call.1} parent=1 // pred_fallthru
      _
    // Predicated region
    $region26: #{tpu_custom_call.1} parent=1 // pred_check
      _
    $region27: #{tpu_custom_call.1} parent=1 // pred_check_branch
      %89 = sbr.rel (0) target = $region29
    $region28: #{tpu_custom_call.1} parent=1 // pred_region
      %90 = dma.done [#allocation3], 2048
    $region29: #{tpu_custom_call.1} parent=1 // pred_fallthru
      _
    // Predicated region
    $region30: #{tpu_custom_call.1} parent=1 // pred_check
      _
    $region31: #{tpu_custom_call.1} parent=1 // pred_check_branch
      %92 = sbr.rel (0) target = $region33
    $region32: #{tpu_custom_call.1} parent=1 // pred_region
      %93 = dma.done [#allocation6], 2048
    $region33: #{tpu_custom_call.1} parent=1 // pred_fallthru
      _
    // Predicated region
    $region34: #{tpu_custom_call.1} parent=1 // pred_check
      _
    $region35: #{tpu_custom_call.1} parent=1 // pred_check_branch
      %95 = sbr.rel (0) target = $region37
    $region36: #{tpu_custom_call.1} parent=1 // pred_region
      %96 = dma.done [#allocation6], 3072
    $region37: #{tpu_custom_call.1} parent=1 // pred_fallthru
      _
    // Predicated region
    $region38: #{tpu_custom_call.1} parent=1 // pred_check
      _
    $region39: #{tpu_custom_call.1} parent=1 // pred_check_branch
      %98 = sbr.rel (0) target = $region41
    $region40: #{tpu_custom_call.1} parent=1 // pred_region
      %99 = dma.done [#allocation9], 3072
    $region41: #{tpu_custom_call.1} parent=1 // pred_fallthru
      _
    // Predicated region
    $region42: #{tpu_custom_call.1} parent=1 // pred_check
      _
    $region43: #{tpu_custom_call.1} parent=1 // pred_check_branch
      %101 = sbr.rel (0) target = $region45
    $region44: #{tpu_custom_call.1} parent=1 // pred_region
      %102 = dma.done [#allocation9], 1024
    $region45: #{tpu_custom_call.1} parent=1 // pred_fallthru
      _
    // Predicated region
    $region46: #{tpu_custom_call.1} parent=1 // pred_check
      _
    $region47: #{tpu_custom_call.1} parent=1 // pred_check_branch
      %104 = sbr.rel (0) target = $region49
    $region48: #{tpu_custom_call.1} parent=1 // pred_region
      %105 = dma.done [#allocation12], 1024
    $region49: #{tpu_custom_call.1} parent=1 // pred_fallthru
      _
    %v107 = vld [vmem:[#allocation5] sm:$0xff]
    %v108 = vld [vmem:[#allocation5 + $0x8] sm:$0xff]
    %v109 = vld [vmem:[#allocation5 + $0x10] sm:$0xff]
    %v110 = vld [vmem:[#allocation5 + $0x18] sm:$0xff]
    %v111 = vld [vmem:[#allocation5 + $0x20] sm:$0xff]
    %v112 = vld [vmem:[#allocation5 + $0x28] sm:$0xff]
    %v113 = vld [vmem:[#allocation5 + $0x30] sm:$0xff]
    %v114 = vld [vmem:[#allocation5 + $0x38] sm:$0xff]
    %v115 = vmul.f32 %v107, %v107
    %v116 = vmul.f32 %v108, %v108
    %v117 = vmul.f32 %v109, %v109
    %v118 = vmul.f32 %v110, %v110
    %v119 = vmul.f32 %v111, %v111
    %v120 = vmul.f32 %v112, %v112
    %v121 = vmul.f32 %v113, %v113
    %v122 = vmul.f32 %v114, %v114
    %123 = vadd.xlane.f32.xlu0 %v115
    %v124 = vpop.xlane.xlu0 %123
    %125 = vadd.xlane.f32.xlu0 %v116
    %v126 = vpop.xlane.xlu0 %125
    %127 = vadd.xlane.f32.xlu0 %v117
    %v128 = vpop.xlane.xlu0 %127
    %129 = vadd.xlane.f32.xlu0 %v118
    %v130 = vpop.xlane.xlu0 %129
    %131 = vadd.xlane.f32.xlu0 %v119
    %v132 = vpop.xlane.xlu0 %131
    %133 = vadd.xlane.f32.xlu0 %v120
    %v134 = vpop.xlane.xlu0 %133
    %135 = vadd.xlane.f32.xlu0 %v121
    %v136 = vpop.xlane.xlu0 %135
    %137 = vadd.xlane.f32.xlu0 %v122
    %v138 = vpop.xlane.xlu0 %137
    %v139 = vrcp.pop 128.0
    %v140 = vmul.f32 %v124, %v139
    %v141 = vmul.f32 %v126, %v139
    %v142 = vmul.f32 %v128, %v139
    %v143 = vmul.f32 %v130, %v139
    %v144 = vmul.f32 %v132, %v139
    %v145 = vmul.f32 %v134, %v139
    %v146 = vmul.f32 %v136, %v139
    %v147 = vmul.f32 %v138, %v139
    %v148 = vadd.f32 %v140, 1.1920929e-07
    %v149 = vadd.f32 %v141, 1.1920929e-07
    %v150 = vadd.f32 %v142, 1.1920929e-07
    %v151 = vadd.f32 %v143, 1.1920929e-07
    %v152 = vadd.f32 %v144, 1.1920929e-07
    %v153 = vadd.f32 %v145, 1.1920929e-07
    %v154 = vadd.f32 %v146, 1.1920929e-07
    %v155 = vadd.f32 %v147, 1.1920929e-07
    %v156 = vrsqrt.pop %v148
    %v157 = vrsqrt.pop %v149
    %v158 = vrsqrt.pop %v150
    %v159 = vrsqrt.pop %v151
    %v160 = vrsqrt.pop %v152
    %v161 = vrsqrt.pop %v153
    %v162 = vrsqrt.pop %v154
    %v163 = vrsqrt.pop %v155
    %v164 = vmul.f32 %v107, %v156
    %v165 = vmul.f32 %v108, %v157
    %v166 = vmul.f32 %v109, %v158
    %v167 = vmul.f32 %v110, %v159
    %v168 = vmul.f32 %v111, %v160
    %v169 = vmul.f32 %v112, %v161
    %v170 = vmul.f32 %v113, %v162
    %v171 = vmul.f32 %v114, %v163
    %v172 = vpack.c.bf16 %v165, %v164
    %v173 = vpack.c.bf16 %v167, %v166
    %v174 = vpack.c.bf16 %v169, %v168
    %v175 = vpack.c.bf16 %v171, %v170
    %v176 = vld [vmem:[#allocation7] sm:$0xff]
    %v177 = vld [vmem:[#allocation7 + $0x8] sm:$0xf]
    %v178 = vld [vmem:[#allocation7 + $0xc] sm:$0xff]
    %v179 = vld [vmem:[#allocation7 + $0x14] sm:$0xf]
    %v180 = vld [vmem:[#allocation7 + $0x18] sm:$0xff]
    %v181 = vld [vmem:[#allocation7 + $0x20] sm:$0xf]
    %v182 = vld [vmem:[#allocation7 + $0x24] sm:$0xff]
    %v183 = vld [vmem:[#allocation7 + $0x2c] sm:$0xf]
    %v184 = vld [vmem:[#allocation7 + $0x30] sm:$0xff]
    %v185 = vld [vmem:[#allocation7 + $0x38] sm:$0xf]
    %v186 = vld [vmem:[#allocation7 + $0x3c] sm:$0xff]
    %v187 = vld [vmem:[#allocation7 + $0x44] sm:$0xf]
    %v188 = vld [vmem:[#allocation7 + $0x48] sm:$0xff]
    %v189 = vld [vmem:[#allocation7 + $0x50] sm:$0xf]
    %v190 = vld [vmem:[#allocation7 + $0x54] sm:$0xff]
    %v191 = vld [vmem:[#allocation7 + $0x5c] sm:$0xf]
    %v192 = vld [vmem:[#allocation7 + $0x60] sm:$0xff]
    %v193 = vld [vmem:[#allocation7 + $0x68] sm:$0xf]
    %v194 = vld [vmem:[#allocation7 + $0x6c] sm:$0xff]
    %v195 = vld [vmem:[#allocation7 + $0x74] sm:$0xf]
    %v196 = vld [vmem:[#allocation7 + $0x78] sm:$0xff]
    %v197 = vld [vmem:[#allocation7 + $0x80] sm:$0xf]
    %v198 = vld [vmem:[#allocation7 + $0x84] sm:$0xff]
    %v199 = vld [vmem:[#allocation7 + $0x8c] sm:$0xf]
    %v200 = vld [vmem:[#allocation7 + $0x90] sm:$0xff]
    %v201 = vld [vmem:[#allocation7 + $0x98] sm:$0xf]
    %v202 = vld [vmem:[#allocation7 + $0x9c] sm:$0xff]
    %v203 = vld [vmem:[#allocation7 + $0xa4] sm:$0xf]
    %v204 = vld [vmem:[#allocation7 + $0xa8] sm:$0xff]
    %v205 = vld [vmem:[#allocation7 + $0xb0] sm:$0xf]
    %v206 = vld [vmem:[#allocation7 + $0xb4] sm:$0xff]
    %v207 = vld [vmem:[#allocation7 + $0xbc] sm:$0xf]
    %v240 = vunpack.c.l.b16 %v176
    %v241 = vunpack.c.h.b16 %v176
    %v242 = vunpack.c.l.b16 %v177
    %v243 = vunpack.c.l.b16 %v178
    %v244 = vunpack.c.h.b16 %v178
    %v245 = vunpack.c.l.b16 %v179
    %v246 = vunpack.c.l.b16 %v180
    %v247 = vunpack.c.h.b16 %v180
    %v248 = vunpack.c.l.b16 %v181
    %v249 = vunpack.c.l.b16 %v182
    %v250 = vunpack.c.h.b16 %v182
    %v251 = vunpack.c.l.b16 %v183
    %v252 = vunpack.c.l.b16 %v184
    %v253 = vunpack.c.h.b16 %v184
    %v254 = vunpack.c.l.b16 %v185
    %v255 = vunpack.c.l.b16 %v186
    %v256 = vunpack.c.h.b16 %v186
    %v257 = vunpack.c.l.b16 %v187
    %v258 = vunpack.c.l.b16 %v188
    %v259 = vunpack.c.h.b16 %v188
    %v260 = vunpack.c.l.b16 %v189
    %v261 = vunpack.c.l.b16 %v190
    %v262 = vunpack.c.h.b16 %v190
    %v263 = vunpack.c.l.b16 %v191
    %v264 = vunpack.c.l.b16 %v192
    %v265 = vunpack.c.h.b16 %v192
    %v266 = vunpack.c.l.b16 %v193
    %v267 = vunpack.c.l.b16 %v194
    %v268 = vunpack.c.h.b16 %v194
    %v269 = vunpack.c.l.b16 %v195
    %v270 = vunpack.c.l.b16 %v196
    %v271 = vunpack.c.h.b16 %v196
    %v272 = vunpack.c.l.b16 %v197
    %v273 = vunpack.c.l.b16 %v198
    %v274 = vunpack.c.h.b16 %v198
    %v275 = vunpack.c.l.b16 %v199
    %v276 = vunpack.c.l.b16 %v200
    %v277 = vunpack.c.h.b16 %v200
    %v278 = vunpack.c.l.b16 %v201
    %v279 = vunpack.c.l.b16 %v202
    %v280 = vunpack.c.h.b16 %v202
    %v281 = vunpack.c.l.b16 %v203
    %v282 = vunpack.c.l.b16 %v204
    %v283 = vunpack.c.h.b16 %v204
    %v284 = vunpack.c.l.b16 %v205
    %v285 = vunpack.c.l.b16 %v206
    %v286 = vunpack.c.h.b16 %v206
    %v287 = vunpack.c.l.b16 %v207
    %v288 = vpack.c.b16 %v243, %v240
    %v289 = vpack.c.b16 %v244, %v241
    %v290 = vpack.c.b16 %v245, %v242
    %v291 = vpack.c.b16 %v249, %v246
    %v292 = vpack.c.b16 %v250, %v247
    %v293 = vpack.c.b16 %v251, %v248
    %v294 = vpack.c.b16 %v255, %v252
    %v295 = vpack.c.b16 %v256, %v253
    %v296 = vpack.c.b16 %v257, %v254
    %v297 = vpack.c.b16 %v261, %v258
    %v298 = vpack.c.b16 %v262, %v259
    %v299 = vpack.c.b16 %v263, %v260
    %v300 = vpack.c.b16 %v267, %v264
    %v301 = vpack.c.b16 %v268, %v265
    %v302 = vpack.c.b16 %v269, %v266
    %v303 = vpack.c.b16 %v273, %v270
    %v304 = vpack.c.b16 %v274, %v271
    %v305 = vpack.c.b16 %v275, %v272
    %v306 = vpack.c.b16 %v279, %v276
    %v307 = vpack.c.b16 %v280, %v277
    %v308 = vpack.c.b16 %v281, %v278
    %v309 = vpack.c.b16 %v285, %v282
    %v310 = vpack.c.b16 %v286, %v283
    %v311 = vpack.c.b16 %v287, %v284
    %336 = vmatprep.subr.bf16.mxu0 %v310
    %337 = vmatpush1.bf16.msra.mxu0 %v309
    %338 = vmatprep.subr.bf16.mxu0 %v307
    %339 = vmatpush1.bf16.msra.mxu0 %v306
    %340 = vmatprep.subr.bf16.mxu0 %v304
    %341 = vmatpush1.bf16.msra.mxu0 %v303
    %342 = vmatprep.subr.bf16.mxu0 %v301
    %343 = vmatpush1.bf16.msra.mxu0 %v300
    %344 = vmatprep.subr.bf16.mxu0 %v298
    %345 = vmatpush1.bf16.msra.mxu0 %v297
    %346 = vmatprep.subr.bf16.mxu0 %v295
    %347 = vmatpush1.bf16.msra.mxu0 %v294
    %348 = vmatprep.subr.bf16.mxu0 %v292
    %349 = vmatpush1.bf16.msra.mxu0 %v291
    %350 = vmatprep.subr.bf16.mxu0 %v289
    %351 = vmatpush1.bf16.msra.mxu0 %v288
    %352 = vmatprep.subr.bf16.mxu0 0
    %353 = vmatpush2.bf16.msra.mxu0 0
    %354 = vmatprep.subr.bf16.mxu0 0
    %355 = vmatpush2.bf16.msra.mxu0 0
    %356 = vmatprep.subr.bf16.mxu0 0
    %357 = vmatpush2.bf16.msra.mxu0 0
    %358 = vmatprep.subr.bf16.mxu0 0
    %359 = vmatpush2.bf16.msra.mxu0 0
    %360 = vmatprep.subr.bf16.mxu0 0
    %361 = vmatpush2.bf16.msra.mxu0 0
    %362 = vmatprep.subr.bf16.mxu0 0
    %363 = vmatpush2.bf16.msra.mxu0 0
    %364 = vmatprep.subr.bf16.mxu0 0
    %365 = vmatpush2.bf16.msra.mxu0 0
    %366 = vmatprep.subr.bf16.mxu0 0
    %367 = vmatpush2.bf16.msra.mxu0 0
    %368 = vmatprep.mubr.bf16.mxu0 0
    %369 = vmatmul.mubr.bf16.gmra.mxu0 %v172
    %v370 = vpop.f32.mrf.mxu0
    %v371 = vadd.f32 0.0, %v370
    %v372 = vpop.f32.mrf.mxu0
    %v373 = vadd.f32 0.0, %v372
    %v374 = vpop.f32.mrf.mxu0
    %v375 = vadd.f32 0.0, %v374
    %v376 = vpop.f32.mrf.mxu0
    %v377 = vadd.f32 0.0, %v376
    %378 = vmatprep.mubr.bf16.mxu0 0
    %379 = vmatmul.mubr.bf16.gmra.mxu0 %v173
    %v380 = vpop.f32.mrf.mxu0
    %v381 = vadd.f32 0.0, %v380
    %v382 = vpop.f32.mrf.mxu0
    %v383 = vadd.f32 0.0, %v382
    %v384 = vpop.f32.mrf.mxu0
    %v385 = vadd.f32 0.0, %v384
    %v386 = vpop.f32.mrf.mxu0
    %v387 = vadd.f32 0.0, %v386
    %388 = vmatprep.mubr.bf16.mxu0 0
    %389 = vmatmul.mubr.bf16.gmra.mxu0 %v174
    %v390 = vpop.f32.mrf.mxu0
    %v391 = vadd.f32 0.0, %v390
    %v392 = vpop.f32.mrf.mxu0
    %v393 = vadd.f32 0.0, %v392
    %v394 = vpop.f32.mrf.mxu0
    %v395 = vadd.f32 0.0, %v394
    %v396 = vpop.f32.mrf.mxu0
    %v397 = vadd.f32 0.0, %v396
    %398 = vmatprep.mubr.bf16.mxu0 0
    %399 = vmatmul.mubr.bf16.gmra.mxu0 %v175
    %v400 = vpop.f32.mrf.mxu0
    %v401 = vadd.f32 0.0, %v400
    %v402 = vpop.f32.mrf.mxu0
    %v403 = vadd.f32 0.0, %v402
    %v404 = vpop.f32.mrf.mxu0
    %v405 = vadd.f32 0.0, %v404
    %v406 = vpop.f32.mrf.mxu0
    %v407 = vadd.f32 0.0, %v406
    %408 = vdwg.mxu0
    %409 = vmatprep.subr.bf16.mxu0 0
    %410 = vmatpush1.bf16.msra.mxu0 %v311
    %411 = vmatprep.subr.bf16.mxu0 0
    %412 = vmatpush1.bf16.msra.mxu0 %v308
    %413 = vmatprep.subr.bf16.mxu0 0
    %414 = vmatpush1.bf16.msra.mxu0 %v305
    %415 = vmatprep.subr.bf16.mxu0 0
    %416 = vmatpush1.bf16.msra.mxu0 %v302
    %417 = vmatprep.subr.bf16.mxu0 0
    %418 = vmatpush1.bf16.msra.mxu0 %v299
    %419 = vmatprep.subr.bf16.mxu0 0
    %420 = vmatpush1.bf16.msra.mxu0 %v296
    %421 = vmatprep.subr.bf16.mxu0 0
    %422 = vmatpush1.bf16.msra.mxu0 %v293
    %423 = vmatprep.subr.bf16.mxu0 0
    %424 = vmatpush1.bf16.msra.mxu0 %v290
    %425 = vmatprep.subr.bf16.mxu0 0
    %426 = vmatpush2.bf16.msra.mxu0 0
    %427 = vmatprep.subr.bf16.mxu0 0
    %428 = vmatpush2.bf16.msra.mxu0 0
    %429 = vmatprep.subr.bf16.mxu0 0
    %430 = vmatpush2.bf16.msra.mxu0 0
    %431 = vmatprep.subr.bf16.mxu0 0
    %432 = vmatpush2.bf16.msra.mxu0 0
    %433 = vmatprep.subr.bf16.mxu0 0
    %434 = vmatpush2.bf16.msra.mxu0 0
    %435 = vmatprep.subr.bf16.mxu0 0
    %436 = vmatpush2.bf16.msra.mxu0 0
    %437 = vmatprep.subr.bf16.mxu0 0
    %438 = vmatpush2.bf16.msra.mxu0 0
    %439 = vmatprep.subr.bf16.mxu0 0
    %440 = vmatpush2.bf16.msra.mxu0 0
    %441 = vmatprep.mubr.bf16.mxu0 0
    %442 = vmatmul.mubr.bf16.gmra.mxu0 %v172
    %v443 = vpop.f32.mrf.mxu0
    %v444 = vadd.f32 0.0, %v443
    %v445 = vpop.f32.mrf.mxu0
    %v446 = vpop.f32.mrf.mxu0
    %v447 = vadd.f32 0.0, %v446
    %v448 = vpop.f32.mrf.mxu0
    %449 = vmatprep.mubr.bf16.mxu0 0
    %450 = vmatmul.mubr.bf16.gmra.mxu0 %v173
    %v451 = vpop.f32.mrf.mxu0
    %v452 = vadd.f32 0.0, %v451
    %v453 = vpop.f32.mrf.mxu0
    %v454 = vpop.f32.mrf.mxu0
    %v455 = vadd.f32 0.0, %v454
    %v456 = vpop.f32.mrf.mxu0
    %457 = vmatprep.mubr.bf16.mxu0 0
    %458 = vmatmul.mubr.bf16.gmra.mxu0 %v174
    %v459 = vpop.f32.mrf.mxu0
    %v460 = vadd.f32 0.0, %v459
    %v461 = vpop.f32.mrf.mxu0
    %v462 = vpop.f32.mrf.mxu0
    %v463 = vadd.f32 0.0, %v462
    %v464 = vpop.f32.mrf.mxu0
    %465 = vmatprep.mubr.bf16.mxu0 0
    %466 = vmatmul.mubr.bf16.gmra.mxu0 %v175
    %v467 = vpop.f32.mrf.mxu0
    %v468 = vadd.f32 0.0, %v467
    %v469 = vpop.f32.mrf.mxu0
    %v470 = vpop.f32.mrf.mxu0
    %v471 = vadd.f32 0.0, %v470
    %v472 = vpop.f32.mrf.mxu0
    %473 = vdwg.mxu0
    %v474 = vld [vmem:[#allocation5 + $0x40] sm:$0xff]
    %v475 = vld [vmem:[#allocation5 + $0x48] sm:$0xff]
    %v476 = vld [vmem:[#allocation5 + $0x50] sm:$0xff]
    %v477 = vld [vmem:[#allocation5 + $0x58] sm:$0xff]
    %v478 = vld [vmem:[#allocation5 + $0x60] sm:$0xff]
    %v479 = vld [vmem:[#allocation5 + $0x68] sm:$0xff]
    %v480 = vld [vmem:[#allocation5 + $0x70] sm:$0xff]
    %v481 = vld [vmem:[#allocation5 + $0x78] sm:$0xff]
    %v482 = vpack.c.bf16 %v475, %v474
    %v483 = vpack.c.bf16 %v477, %v476
    %v484 = vpack.c.bf16 %v479, %v478
    %v485 = vpack.c.bf16 %v481, %v480
    %v486 = vld [vmem:[#allocation8] sm:$0xff]
    %v487 = vld [vmem:[#allocation8 + $0x8] sm:$0xf]
    %v488 = vld [vmem:[#allocation8 + $0xc] sm:$0xff]
    %v489 = vld [vmem:[#allocation8 + $0x14] sm:$0xf]
    %v490 = vld [vmem:[#allocation8 + $0x18] sm:$0xff]
    %v491 = vld [vmem:[#allocation8 + $0x20] sm:$0xf]
    %v492 = vld [vmem:[#allocation8 + $0x24] sm:$0xff]
    %v493 = vld [vmem:[#allocation8 + $0x2c] sm:$0xf]
    %v494 = vld [vmem:[#allocation8 + $0x30] sm:$0xff]
    %v495 = vld [vmem:[#allocation8 + $0x38] sm:$0xf]
    %v496 = vld [vmem:[#allocation8 + $0x3c] sm:$0xff]
    %v497 = vld [vmem:[#allocation8 + $0x44] sm:$0xf]
    %v498 = vld [vmem:[#allocation8 + $0x48] sm:$0xff]
    %v499 = vld [vmem:[#allocation8 + $0x50] sm:$0xf]
    %v500 = vld [vmem:[#allocation8 + $0x54] sm:$0xff]
    %v501 = vld [vmem:[#allocation8 + $0x5c] sm:$0xf]
    %v502 = vld [vmem:[#allocation8 + $0x60] sm:$0xff]
    %v503 = vld [vmem:[#allocation8 + $0x68] sm:$0xf]
    %v504 = vld [vmem:[#allocation8 + $0x6c] sm:$0xff]
    %v505 = vld [vmem:[#allocation8 + $0x74] sm:$0xf]
    %v506 = vld [vmem:[#allocation8 + $0x78] sm:$0xff]
    %v507 = vld [vmem:[#allocation8 + $0x80] sm:$0xf]
    %v508 = vld [vmem:[#allocation8 + $0x84] sm:$0xff]
    %v509 = vld [vmem:[#allocation8 + $0x8c] sm:$0xf]
    %v510 = vld [vmem:[#allocation8 + $0x90] sm:$0xff]
    %v511 = vld [vmem:[#allocation8 + $0x98] sm:$0xf]
    %v512 = vld [vmem:[#allocation8 + $0x9c] sm:$0xff]
    %v513 = vld [vmem:[#allocation8 + $0xa4] sm:$0xf]
    %v514 = vld [vmem:[#allocation8 + $0xa8] sm:$0xff]
    %v515 = vld [vmem:[#allocation8 + $0xb0] sm:$0xf]
    %v516 = vld [vmem:[#allocation8 + $0xb4] sm:$0xff]
    %v517 = vld [vmem:[#allocation8 + $0xbc] sm:$0xf]
    %v550 = vunpack.c.l.b16 %v486
    %v551 = vunpack.c.h.b16 %v486
    %v552 = vunpack.c.l.b16 %v487
    %v553 = vunpack.c.l.b16 %v488
    %v554 = vunpack.c.h.b16 %v488
    %v555 = vunpack.c.l.b16 %v489
    %v556 = vunpack.c.l.b16 %v490
    %v557 = vunpack.c.h.b16 %v490
    %v558 = vunpack.c.l.b16 %v491
    %v559 = vunpack.c.l.b16 %v492
    %v560 = vunpack.c.h.b16 %v492
    %v561 = vunpack.c.l.b16 %v493
    %v562 = vunpack.c.l.b16 %v494
    %v563 = vunpack.c.h.b16 %v494
    %v564 = vunpack.c.l.b16 %v495
    %v565 = vunpack.c.l.b16 %v496
    %v566 = vunpack.c.h.b16 %v496
    %v567 = vunpack.c.l.b16 %v497
    %v568 = vunpack.c.l.b16 %v498
    %v569 = vunpack.c.h.b16 %v498
    %v570 = vunpack.c.l.b16 %v499
    %v571 = vunpack.c.l.b16 %v500
    %v572 = vunpack.c.h.b16 %v500
    %v573 = vunpack.c.l.b16 %v501
    %v574 = vunpack.c.l.b16 %v502
    %v575 = vunpack.c.h.b16 %v502
    %v576 = vunpack.c.l.b16 %v503
    %v577 = vunpack.c.l.b16 %v504
    %v578 = vunpack.c.h.b16 %v504
    %v579 = vunpack.c.l.b16 %v505
    %v580 = vunpack.c.l.b16 %v506
    %v581 = vunpack.c.h.b16 %v506
    %v582 = vunpack.c.l.b16 %v507
    %v583 = vunpack.c.l.b16 %v508
    %v584 = vunpack.c.h.b16 %v508
    %v585 = vunpack.c.l.b16 %v509
    %v586 = vunpack.c.l.b16 %v510
    %v587 = vunpack.c.h.b16 %v510
    %v588 = vunpack.c.l.b16 %v511
    %v589 = vunpack.c.l.b16 %v512
    %v590 = vunpack.c.h.b16 %v512
    %v591 = vunpack.c.l.b16 %v513
    %v592 = vunpack.c.l.b16 %v514
    %v593 = vunpack.c.h.b16 %v514
    %v594 = vunpack.c.l.b16 %v515
    %v595 = vunpack.c.l.b16 %v516
    %v596 = vunpack.c.h.b16 %v516
    %v597 = vunpack.c.l.b16 %v517
    %v598 = vpack.c.b16 %v553, %v550
    %v599 = vpack.c.b16 %v554, %v551
    %v600 = vpack.c.b16 %v555, %v552
    %v601 = vpack.c.b16 %v559, %v556
    %v602 = vpack.c.b16 %v560, %v557
    %v603 = vpack.c.b16 %v561, %v558
    %v604 = vpack.c.b16 %v565, %v562
    %v605 = vpack.c.b16 %v566, %v563
    %v606 = vpack.c.b16 %v567, %v564
    %v607 = vpack.c.b16 %v571, %v568
    %v608 = vpack.c.b16 %v572, %v569
    %v609 = vpack.c.b16 %v573, %v570
    %v610 = vpack.c.b16 %v577, %v574
    %v611 = vpack.c.b16 %v578, %v575
    %v612 = vpack.c.b16 %v579, %v576
    %v613 = vpack.c.b16 %v583, %v580
    %v614 = vpack.c.b16 %v584, %v581
    %v615 = vpack.c.b16 %v585, %v582
    %v616 = vpack.c.b16 %v589, %v586
    %v617 = vpack.c.b16 %v590, %v587
    %v618 = vpack.c.b16 %v591, %v588
    %v619 = vpack.c.b16 %v595, %v592
    %v620 = vpack.c.b16 %v596, %v593
    %v621 = vpack.c.b16 %v597, %v594
    %646 = vmatprep.subr.bf16.mxu0 %v620
    %647 = vmatpush1.bf16.msra.mxu0 %v619
    %648 = vmatprep.subr.bf16.mxu0 %v617
    %649 = vmatpush1.bf16.msra.mxu0 %v616
    %650 = vmatprep.subr.bf16.mxu0 %v614
    %651 = vmatpush1.bf16.msra.mxu0 %v613
    %652 = vmatprep.subr.bf16.mxu0 %v611
    %653 = vmatpush1.bf16.msra.mxu0 %v610
    %654 = vmatprep.subr.bf16.mxu0 %v608
    %655 = vmatpush1.bf16.msra.mxu0 %v607
    %656 = vmatprep.subr.bf16.mxu0 %v605
    %657 = vmatpush1.bf16.msra.mxu0 %v604
    %658 = vmatprep.subr.bf16.mxu0 %v602
    %659 = vmatpush1.bf16.msra.mxu0 %v601
    %660 = vmatprep.subr.bf16.mxu0 %v599
    %661 = vmatpush1.bf16.msra.mxu0 %v598
    %662 = vmatprep.subr.bf16.mxu0 0
    %663 = vmatpush2.bf16.msra.mxu0 0
    %664 = vmatprep.subr.bf16.mxu0 0
    %665 = vmatpush2.bf16.msra.mxu0 0
    %666 = vmatprep.subr.bf16.mxu0 0
    %667 = vmatpush2.bf16.msra.mxu0 0
    %668 = vmatprep.subr.bf16.mxu0 0
    %669 = vmatpush2.bf16.msra.mxu0 0
    %670 = vmatprep.subr.bf16.mxu0 0
    %671 = vmatpush2.bf16.msra.mxu0 0
    %672 = vmatprep.subr.bf16.mxu0 0
    %673 = vmatpush2.bf16.msra.mxu0 0
    %674 = vmatprep.subr.bf16.mxu0 0
    %675 = vmatpush2.bf16.msra.mxu0 0
    %676 = vmatprep.subr.bf16.mxu0 0
    %677 = vmatpush2.bf16.msra.mxu0 0
    %678 = vmatprep.mubr.bf16.mxu0 0
    %679 = vmatmul.mubr.bf16.gmra.mxu0 %v482
    %v680 = vpop.f32.mrf.mxu0
    %v681 = vadd.f32 0.0, %v680
    %v682 = vpop.f32.mrf.mxu0
    %v683 = vadd.f32 0.0, %v682
    %v684 = vpop.f32.mrf.mxu0
    %v685 = vadd.f32 0.0, %v684
    %v686 = vpop.f32.mrf.mxu0
    %v687 = vadd.f32 0.0, %v686
    %688 = vmatprep.mubr.bf16.mxu0 0
    %689 = vmatmul.mubr.bf16.gmra.mxu0 %v483
    %v690 = vpop.f32.mrf.mxu0
    %v691 = vadd.f32 0.0, %v690
    %v692 = vpop.f32.mrf.mxu0
    %v693 = vadd.f32 0.0, %v692
    %v694 = vpop.f32.mrf.mxu0
    %v695 = vadd.f32 0.0, %v694
    %v696 = vpop.f32.mrf.mxu0
    %v697 = vadd.f32 0.0, %v696
    %698 = vmatprep.mubr.bf16.mxu0 0
    %699 = vmatmul.mubr.bf16.gmra.mxu0 %v484
    %v700 = vpop.f32.mrf.mxu0
    %v701 = vadd.f32 0.0, %v700
    %v702 = vpop.f32.mrf.mxu0
    %v703 = vadd.f32 0.0, %v702
    %v704 = vpop.f32.mrf.mxu0
    %v705 = vadd.f32 0.0, %v704
    %v706 = vpop.f32.mrf.mxu0
    %v707 = vadd.f32 0.0, %v706
    %708 = vmatprep.mubr.bf16.mxu0 0
    %709 = vmatmul.mubr.bf16.gmra.mxu0 %v485
    %v710 = vpop.f32.mrf.mxu0
    %v711 = vadd.f32 0.0, %v710
    %v712 = vpop.f32.mrf.mxu0
    %v713 = vadd.f32 0.0, %v712
    %v714 = vpop.f32.mrf.mxu0
    %v715 = vadd.f32 0.0, %v714
    %v716 = vpop.f32.mrf.mxu0
    %v717 = vadd.f32 0.0, %v716
    %718 = vdwg.mxu0
    %719 = vmatprep.subr.bf16.mxu0 0
    %720 = vmatpush1.bf16.msra.mxu0 %v621
    %721 = vmatprep.subr.bf16.mxu0 0
    %722 = vmatpush1.bf16.msra.mxu0 %v618
    %723 = vmatprep.subr.bf16.mxu0 0
    %724 = vmatpush1.bf16.msra.mxu0 %v615
    %725 = vmatprep.subr.bf16.mxu0 0
    %726 = vmatpush1.bf16.msra.mxu0 %v612
    %727 = vmatprep.subr.bf16.mxu0 0
    %728 = vmatpush1.bf16.msra.mxu0 %v609
    %729 = vmatprep.subr.bf16.mxu0 0
    %730 = vmatpush1.bf16.msra.mxu0 %v606
    %731 = vmatprep.subr.bf16.mxu0 0
    %732 = vmatpush1.bf16.msra.mxu0 %v603
    %733 = vmatprep.subr.bf16.mxu0 0
    %734 = vmatpush1.bf16.msra.mxu0 %v600
    %735 = vmatprep.subr.bf16.mxu0 0
    %736 = vmatpush2.bf16.msra.mxu0 0
    %737 = vmatprep.subr.bf16.mxu0 0
    %738 = vmatpush2.bf16.msra.mxu0 0
    %739 = vmatprep.subr.bf16.mxu0 0
    %740 = vmatpush2.bf16.msra.mxu0 0
    %741 = vmatprep.subr.bf16.mxu0 0
    %742 = vmatpush2.bf16.msra.mxu0 0
    %743 = vmatprep.subr.bf16.mxu0 0
    %744 = vmatpush2.bf16.msra.mxu0 0
    %745 = vmatprep.subr.bf16.mxu0 0
    %746 = vmatpush2.bf16.msra.mxu0 0
    %747 = vmatprep.subr.bf16.mxu0 0
    %748 = vmatpush2.bf16.msra.mxu0 0
    %749 = vmatprep.subr.bf16.mxu0 0
    %750 = vmatpush2.bf16.msra.mxu0 0
    %751 = vmatprep.mubr.bf16.mxu0 0
    %752 = vmatmul.mubr.bf16.gmra.mxu0 %v482
    %v753 = vpop.f32.mrf.mxu0
    %v754 = vadd.f32 0.0, %v753
    %v755 = vpop.f32.mrf.mxu0
    %v756 = vpop.f32.mrf.mxu0
    %v757 = vadd.f32 0.0, %v756
    %v758 = vpop.f32.mrf.mxu0
    %759 = vmatprep.mubr.bf16.mxu0 0
    %760 = vmatmul.mubr.bf16.gmra.mxu0 %v483
    %v761 = vpop.f32.mrf.mxu0
    %v762 = vadd.f32 0.0, %v761
    %v763 = vpop.f32.mrf.mxu0
    %v764 = vpop.f32.mrf.mxu0
    %v765 = vadd.f32 0.0, %v764
    %v766 = vpop.f32.mrf.mxu0
    %767 = vmatprep.mubr.bf16.mxu0 0
    %768 = vmatmul.mubr.bf16.gmra.mxu0 %v484
    %v769 = vpop.f32.mrf.mxu0
    %v770 = vadd.f32 0.0, %v769
    %v771 = vpop.f32.mrf.mxu0
    %v772 = vpop.f32.mrf.mxu0
    %v773 = vadd.f32 0.0, %v772
    %v774 = vpop.f32.mrf.mxu0
    %775 = vmatprep.mubr.bf16.mxu0 0
    %776 = vmatmul.mubr.bf16.gmra.mxu0 %v485
    %v777 = vpop.f32.mrf.mxu0
    %v778 = vadd.f32 0.0, %v777
    %v779 = vpop.f32.mrf.mxu0
    %v780 = vpop.f32.mrf.mxu0
    %v781 = vadd.f32 0.0, %v780
    %v782 = vpop.f32.mrf.mxu0
    %783 = vdwg.mxu0
    %v784 = vld [vmem:[#allocation2] sm:$0xff]
    %v785 = vld [vmem:[#allocation2 + $0x8] sm:$0xff]
    %v786 = vld [vmem:[#allocation2 + $0x10] sm:$0xff]
    %v787 = vld [vmem:[#allocation2 + $0x18] sm:$0xff]
    %v788 = vld [vmem:[#allocation2 + $0x20] sm:$0xff]
    %v789 = vld [vmem:[#allocation2 + $0x28] sm:$0xff]
    %v790 = vld [vmem:[#allocation2 + $0x30] sm:$0xff]
    %v791 = vld [vmem:[#allocation2 + $0x38] sm:$0xff]
    %v792 = vld [vmem:[#allocation2 + $0x40] sm:$0xff]
    %v793 = vld [vmem:[#allocation2 + $0x48] sm:$0xff]
    %v794 = vld [vmem:[#allocation2 + $0x50] sm:$0xff]
    %v795 = vld [vmem:[#allocation2 + $0x58] sm:$0xff]
    %v796 = vld [vmem:[#allocation2 + $0x60] sm:$0xff]
    %v797 = vld [vmem:[#allocation2 + $0x68] sm:$0xff]
    %v798 = vld [vmem:[#allocation2 + $0x70] sm:$0xff]
    %v799 = vld [vmem:[#allocation2 + $0x78] sm:$0xff]
    %v800 = vpack.c.bf16 %v375, %v371
    %v801 = vpack.c.bf16 %v385, %v381
    %v802 = vpack.c.bf16 %v395, %v391
    %v803 = vpack.c.bf16 %v405, %v401
    %v804 = vpack.c.bf16 %v685, %v681
    %v805 = vpack.c.bf16 %v695, %v691
    %v806 = vpack.c.bf16 %v705, %v701
    %v807 = vpack.c.bf16 %v715, %v711
    %v808 = vpack.c.bf16 %v377, %v373
    %v809 = vpack.c.bf16 %v387, %v383
    %v810 = vpack.c.bf16 %v397, %v393
    %v811 = vpack.c.bf16 %v407, %v403
    %v812 = vpack.c.bf16 %v687, %v683
    %v813 = vpack.c.bf16 %v697, %v693
    %v814 = vpack.c.bf16 %v707, %v703
    %v815 = vpack.c.bf16 %v717, %v713
    %v816 = vpack.c.bf16 %v447, %v444
    %v817 = vpack.c.bf16 %v455, %v452
    %v818 = vpack.c.bf16 %v463, %v460
    %v819 = vpack.c.bf16 %v471, %v468
    %v820 = vpack.c.bf16 %v757, %v754
    %v821 = vpack.c.bf16 %v765, %v762
    %v822 = vpack.c.bf16 %v773, %v770
    %v823 = vpack.c.bf16 %v781, %v778
    %vm824 = vcmask 523264
    %v826 = vsel %vm824, %v800, 0
    %v829 = vsel %vm824, %v801, 0
    %v832 = vsel %vm824, %v802, 0
    %v835 = vsel %vm824, %v803, 0
    %v838 = vsel %vm824, %v804, 0
    %v841 = vsel %vm824, %v805, 0
    %v844 = vsel %vm824, %v806, 0
    %v847 = vsel %vm824, %v807, 0
    %v850 = vsel %vm824, %v808, 0
    %v853 = vsel %vm824, %v809, 0
    %v856 = vsel %vm824, %v810, 0
    %v859 = vsel %vm824, %v811, 0
    %v862 = vsel %vm824, %v812, 0
    %v865 = vsel %vm824, %v813, 0
    %v868 = vsel %vm824, %v814, 0
    %v871 = vsel %vm824, %v815, 0
    %873 = vmatprep.subr.bf16.mxu0 0
    %874 = vmatpush1.bf16.xpose.msra.mxu0 %v871
    %875 = vmatprep.subr.bf16.mxu0 0
    %876 = vmatpush1.bf16.xpose.msra.mxu0 %v868
    %877 = vmatprep.subr.bf16.mxu0 0
    %878 = vmatpush1.bf16.xpose.msra.mxu0 %v865
    %879 = vmatprep.subr.bf16.mxu0 0
    %880 = vmatpush1.bf16.xpose.msra.mxu0 %v862
    %881 = vmatprep.subr.bf16.mxu0 0
    %882 = vmatpush1.bf16.xpose.msra.mxu0 %v859
    %883 = vmatprep.subr.bf16.mxu0 0
    %884 = vmatpush1.bf16.xpose.msra.mxu0 %v856
    %885 = vmatprep.subr.bf16.mxu0 0
    %886 = vmatpush1.bf16.xpose.msra.mxu0 %v853
    %887 = vmatprep.subr.bf16.mxu0 0
    %888 = vmatpush1.bf16.xpose.msra.mxu0 %v850
    %889 = vmatprep.subr.bf16.mxu0 0
    %890 = vmatpush2.bf16.xpose.msra.mxu0 0
    %891 = vmatprep.subr.bf16.mxu0 0
    %892 = vmatpush2.bf16.xpose.msra.mxu0 0
    %893 = vmatprep.subr.bf16.mxu0 0
    %894 = vmatpush2.bf16.xpose.msra.mxu0 0
    %895 = vmatprep.subr.bf16.mxu0 0
    %896 = vmatpush2.bf16.xpose.msra.mxu0 0
    %897 = vmatprep.subr.bf16.mxu0 0
    %898 = vmatpush2.bf16.xpose.msra.mxu0 0
    %899 = vmatprep.subr.bf16.mxu0 0
    %900 = vmatpush2.bf16.xpose.msra.mxu0 0
    %901 = vmatprep.subr.bf16.mxu0 0
    %902 = vmatpush2.bf16.xpose.msra.mxu0 0
    %903 = vmatprep.subr.bf16.mxu0 0
    %904 = vmatpush2.bf16.xpose.msra.mxu0 0
    %905 = vmatprep.mubr.bf16.mxu0 0
    %906 = vmatmul.mubr.bf16.gmra.mxu0 %v826
    %v907 = vpop.f32.mrf.mxu0
    %v908 = vadd.f32 0.0, %v907
    %v909 = vpop.f32.mrf.mxu0
    %v910 = vpop.f32.mrf.mxu0
    %v911 = vadd.f32 0.0, %v910
    %v912 = vpop.f32.mrf.mxu0
    %913 = vmatprep.mubr.bf16.mxu0 0
    %914 = vmatmul.mubr.bf16.gmra.mxu0 %v829
    %v915 = vpop.f32.mrf.mxu0
    %v916 = vadd.f32 0.0, %v915
    %v917 = vpop.f32.mrf.mxu0
    %v918 = vpop.f32.mrf.mxu0
    %v919 = vadd.f32 0.0, %v918
    %v920 = vpop.f32.mrf.mxu0
    %921 = vmatprep.mubr.bf16.mxu0 0
    %922 = vmatmul.mubr.bf16.gmra.mxu0 %v832
    %v923 = vpop.f32.mrf.mxu0
    %v924 = vadd.f32 0.0, %v923
    %v925 = vpop.f32.mrf.mxu0
    %v926 = vpop.f32.mrf.mxu0
    %v927 = vadd.f32 0.0, %v926
    %v928 = vpop.f32.mrf.mxu0
    %929 = vmatprep.mubr.bf16.mxu0 0
    %930 = vmatmul.mubr.bf16.gmra.mxu0 %v835
    %v931 = vpop.f32.mrf.mxu0
    %v932 = vadd.f32 0.0, %v931
    %v933 = vpop.f32.mrf.mxu0
    %v934 = vpop.f32.mrf.mxu0
    %v935 = vadd.f32 0.0, %v934
    %v936 = vpop.f32.mrf.mxu0
    %937 = vmatprep.mubr.bf16.mxu0 0
    %938 = vmatmul.mubr.bf16.gmra.mxu0 %v838
    %v939 = vpop.f32.mrf.mxu0
    %v940 = vadd.f32 0.0, %v939
    %v941 = vpop.f32.mrf.mxu0
    %v942 = vpop.f32.mrf.mxu0
    %v943 = vadd.f32 0.0, %v942
    %v944 = vpop.f32.mrf.mxu0
    %945 = vmatprep.mubr.bf16.mxu0 0
    %946 = vmatmul.mubr.bf16.gmra.mxu0 %v841
    %v947 = vpop.f32.mrf.mxu0
    %v948 = vadd.f32 0.0, %v947
    %v949 = vpop.f32.mrf.mxu0
    %v950 = vpop.f32.mrf.mxu0
    %v951 = vadd.f32 0.0, %v950
    %v952 = vpop.f32.mrf.mxu0
    %953 = vmatprep.mubr.bf16.mxu0 0
    %954 = vmatmul.mubr.bf16.gmra.mxu0 %v844
    %v955 = vpop.f32.mrf.mxu0
    %v956 = vadd.f32 0.0, %v955
    %v957 = vpop.f32.mrf.mxu0
    %v958 = vpop.f32.mrf.mxu0
    %v959 = vadd.f32 0.0, %v958
    %v960 = vpop.f32.mrf.mxu0
    %961 = vmatprep.mubr.bf16.mxu0 0
    %962 = vmatmul.mubr.bf16.gmra.mxu0 %v847
    %v963 = vpop.f32.mrf.mxu0
    %v964 = vadd.f32 0.0, %v963
    %v965 = vpop.f32.mrf.mxu0
    %v966 = vpop.f32.mrf.mxu0
    %v967 = vadd.f32 0.0, %v966
    %v968 = vpop.f32.mrf.mxu0
    %969 = vdwg.mxu0
    %v970 = vtanh.pop %v908
    %v971 = vtanh.pop %v911
    %v972 = vtanh.pop %v916
    %v973 = vtanh.pop %v919
    %v974 = vtanh.pop %v924
    %v975 = vtanh.pop %v927
    %v976 = vtanh.pop %v932
    %v977 = vtanh.pop %v935
    %v978 = vtanh.pop %v940
    %v979 = vtanh.pop %v943
    %v980 = vtanh.pop %v948
    %v981 = vtanh.pop %v951
    %v982 = vtanh.pop %v956
    %v983 = vtanh.pop %v959
    %v984 = vtanh.pop %v964
    %v985 = vtanh.pop %v967
    %v986 = vmul.f32 %v970, 50.0
    %v987 = vmul.f32 %v971, 50.0
    %v988 = vmul.f32 %v972, 50.0
    %v989 = vmul.f32 %v973, 50.0
    %v990 = vmul.f32 %v974, 50.0
    %v991 = vmul.f32 %v975, 50.0
    %v992 = vmul.f32 %v976, 50.0
    %v993 = vmul.f32 %v977, 50.0
    %v994 = vmul.f32 %v978, 50.0
    %v995 = vmul.f32 %v979, 50.0
    %v996 = vmul.f32 %v980, 50.0
    %v997 = vmul.f32 %v981, 50.0
    %v998 = vmul.f32 %v982, 50.0
    %v999 = vmul.f32 %v983, 50.0
    %v1000 = vmul.f32 %v984, 50.0
    %v1001 = vmul.f32 %v985, 50.0
    %v1002 = vadd.f32 %v986, %v784
    %v1003 = vadd.f32 %v987, %v785
    %v1004 = vadd.f32 %v988, %v786
    %v1005 = vadd.f32 %v989, %v787
    %v1006 = vadd.f32 %v990, %v788
    %v1007 = vadd.f32 %v991, %v789
    %v1008 = vadd.f32 %v992, %v790
    %v1009 = vadd.f32 %v993, %v791
    %v1010 = vadd.f32 %v994, %v792
    %v1011 = vadd.f32 %v995, %v793
    %v1012 = vadd.f32 %v996, %v794
    %v1013 = vadd.f32 %v997, %v795
    %v1014 = vadd.f32 %v998, %v796
    %v1015 = vadd.f32 %v999, %v797
    %v1016 = vadd.f32 %v1000, %v798
    %v1017 = vadd.f32 %v1001, %v799
    %v1018 = vsub.f32 %v1002, 50.0
    %v1019 = vsub.f32 %v1003, 50.0
    %v1020 = vsub.f32 %v1004, 50.0
    %v1021 = vsub.f32 %v1005, 50.0
    %v1022 = vsub.f32 %v1006, 50.0
    %v1023 = vsub.f32 %v1007, 50.0
    %v1024 = vsub.f32 %v1008, 50.0
    %v1025 = vsub.f32 %v1009, 50.0
    %v1026 = vsub.f32 %v1010, 50.0
    %v1027 = vsub.f32 %v1011, 50.0
    %v1028 = vsub.f32 %v1012, 50.0
    %v1029 = vsub.f32 %v1013, 50.0
    %v1030 = vsub.f32 %v1014, 50.0
    %v1031 = vsub.f32 %v1015, 50.0
    %v1032 = vsub.f32 %v1016, 50.0
    %v1033 = vsub.f32 %v1017, 50.0
    %v1034 = vmul.f32 %v1018, 1.442695
    %v1035 = vpow.pop %v1034
    %v1036 = vmul.f32 %v1019, 1.442695
    %v1037 = vpow.pop %v1036
    %v1038 = vmul.f32 %v1020, 1.442695
    %v1039 = vpow.pop %v1038
    %v1040 = vmul.f32 %v1021, 1.442695
    %v1041 = vpow.pop %v1040
    %v1042 = vmul.f32 %v1022, 1.442695
    %v1043 = vpow.pop %v1042
    %v1044 = vmul.f32 %v1023, 1.442695
    %v1045 = vpow.pop %v1044
    %v1046 = vmul.f32 %v1024, 1.442695
    %v1047 = vpow.pop %v1046
    %v1048 = vmul.f32 %v1025, 1.442695
    %v1049 = vpow.pop %v1048
    %v1050 = vmul.f32 %v1026, 1.442695
    %v1051 = vpow.pop %v1050
    %v1052 = vmul.f32 %v1027, 1.442695
    %v1053 = vpow.pop %v1052
    %v1054 = vmul.f32 %v1028, 1.442695
    %v1055 = vpow.pop %v1054
    %v1056 = vmul.f32 %v1029, 1.442695
    %v1057 = vpow.pop %v1056
    %v1058 = vmul.f32 %v1030, 1.442695
    %v1059 = vpow.pop %v1058
    %v1060 = vmul.f32 %v1031, 1.442695
    %v1061 = vpow.pop %v1060
    %v1062 = vmul.f32 %v1032, 1.442695
    %v1063 = vpow.pop %v1062
    %v1064 = vmul.f32 %v1033, 1.442695
    %v1065 = vpow.pop %v1064
    %1066 = vadd.xlane.f32.xlu0 %v1035
    %v1067 = vpop.xlane.xlu0 %1066
    %1068 = vadd.xlane.f32.xlu0 %v1037
    %v1069 = vpop.xlane.xlu0 %1068
    %1070 = vadd.xlane.f32.xlu0 %v1039
    %v1071 = vpop.xlane.xlu0 %1070
    %1072 = vadd.xlane.f32.xlu0 %v1041
    %v1073 = vpop.xlane.xlu0 %1072
    %1074 = vadd.xlane.f32.xlu0 %v1043
    %v1075 = vpop.xlane.xlu0 %1074
    %1076 = vadd.xlane.f32.xlu0 %v1045
    %v1077 = vpop.xlane.xlu0 %1076
    %1078 = vadd.xlane.f32.xlu0 %v1047
    %v1079 = vpop.xlane.xlu0 %1078
    %1080 = vadd.xlane.f32.xlu0 %v1049
    %v1081 = vpop.xlane.xlu0 %1080
    %1082 = vadd.xlane.f32.xlu0 %v1051
    %v1083 = vpop.xlane.xlu0 %1082
    %1084 = vadd.xlane.f32.xlu0 %v1053
    %v1085 = vpop.xlane.xlu0 %1084
    %1086 = vadd.xlane.f32.xlu0 %v1055
    %v1087 = vpop.xlane.xlu0 %1086
    %1088 = vadd.xlane.f32.xlu0 %v1057
    %v1089 = vpop.xlane.xlu0 %1088
    %1090 = vadd.xlane.f32.xlu0 %v1059
    %v1091 = vpop.xlane.xlu0 %1090
    %1092 = vadd.xlane.f32.xlu0 %v1061
    %v1093 = vpop.xlane.xlu0 %1092
    %1094 = vadd.xlane.f32.xlu0 %v1063
    %v1095 = vpop.xlane.xlu0 %1094
    %1096 = vadd.xlane.f32.xlu0 %v1065
    %v1097 = vpop.xlane.xlu0 %1096
    %v1098 = vpack.c.bf16 %v1037, %v1035
    %v1099 = vpack.c.bf16 %v1041, %v1039
    %v1100 = vpack.c.bf16 %v1045, %v1043
    %v1101 = vpack.c.bf16 %v1049, %v1047
    %v1102 = vpack.c.bf16 %v1053, %v1051
    %v1103 = vpack.c.bf16 %v1057, %v1055
    %v1104 = vpack.c.bf16 %v1061, %v1059
    %v1105 = vpack.c.bf16 %v1065, %v1063
    %1106 = vmatprep.subr.bf16.mxu0 0
    %1107 = vmatpush1.bf16.msra.mxu0 %v823
    %1108 = vmatprep.subr.bf16.mxu0 0
    %1109 = vmatpush1.bf16.msra.mxu0 %v822
    %1110 = vmatprep.subr.bf16.mxu0 0
    %1111 = vmatpush1.bf16.msra.mxu0 %v821
    %1112 = vmatprep.subr.bf16.mxu0 0
    %1113 = vmatpush1.bf16.msra.mxu0 %v820
    %1114 = vmatprep.subr.bf16.mxu0 0
    %1115 = vmatpush1.bf16.msra.mxu0 %v819
    %1116 = vmatprep.subr.bf16.mxu0 0
    %1117 = vmatpush1.bf16.msra.mxu0 %v818
    %1118 = vmatprep.subr.bf16.mxu0 0
    %1119 = vmatpush1.bf16.msra.mxu0 %v817
    %1120 = vmatprep.subr.bf16.mxu0 0
    %1121 = vmatpush1.bf16.msra.mxu0 %v816
    %1122 = vmatprep.subr.bf16.mxu0 0
    %1123 = vmatpush2.bf16.msra.mxu0 0
    %1124 = vmatprep.subr.bf16.mxu0 0
    %1125 = vmatpush2.bf16.msra.mxu0 0
    %1126 = vmatprep.subr.bf16.mxu0 0
    %1127 = vmatpush2.bf16.msra.mxu0 0
    %1128 = vmatprep.subr.bf16.mxu0 0
    %1129 = vmatpush2.bf16.msra.mxu0 0
    %1130 = vmatprep.subr.bf16.mxu0 0
    %1131 = vmatpush2.bf16.msra.mxu0 0
    %1132 = vmatprep.subr.bf16.mxu0 0
    %1133 = vmatpush2.bf16.msra.mxu0 0
    %1134 = vmatprep.subr.bf16.mxu0 0
    %1135 = vmatpush2.bf16.msra.mxu0 0
    %1136 = vmatprep.subr.bf16.mxu0 0
    %1137 = vmatpush2.bf16.msra.mxu0 0
    %1138 = vmatprep.mubr.bf16.mxu0 0
    %1139 = vmatmul.mubr.bf16.gmra.mxu0 %v1098
    %v1140 = vpop.f32.mrf.mxu0
    %v1141 = vadd.f32 0.0, %v1140
    %v1142 = vpop.f32.mrf.mxu0
    %v1143 = vpop.f32.mrf.mxu0
    %v1144 = vadd.f32 0.0, %v1143
    %v1145 = vpop.f32.mrf.mxu0
    %1146 = vmatprep.mubr.bf16.mxu0 0
    %1147 = vmatmul.mubr.bf16.gmra.mxu0 %v1099
    %v1148 = vpop.f32.mrf.mxu0
    %v1149 = vadd.f32 0.0, %v1148
    %v1150 = vpop.f32.mrf.mxu0
    %v1151 = vpop.f32.mrf.mxu0
    %v1152 = vadd.f32 0.0, %v1151
    %v1153 = vpop.f32.mrf.mxu0
    %1154 = vmatprep.mubr.bf16.mxu0 0
    %1155 = vmatmul.mubr.bf16.gmra.mxu0 %v1100
    %v1156 = vpop.f32.mrf.mxu0
    %v1157 = vadd.f32 0.0, %v1156
    %v1158 = vpop.f32.mrf.mxu0
    %v1159 = vpop.f32.mrf.mxu0
    %v1160 = vadd.f32 0.0, %v1159
    %v1161 = vpop.f32.mrf.mxu0
    %1162 = vmatprep.mubr.bf16.mxu0 0
    %1163 = vmatmul.mubr.bf16.gmra.mxu0 %v1101
    %v1164 = vpop.f32.mrf.mxu0
    %v1165 = vadd.f32 0.0, %v1164
    %v1166 = vpop.f32.mrf.mxu0
    %v1167 = vpop.f32.mrf.mxu0
    %v1168 = vadd.f32 0.0, %v1167
    %v1169 = vpop.f32.mrf.mxu0
    %1170 = vmatprep.mubr.bf16.mxu0 0
    %1171 = vmatmul.mubr.bf16.gmra.mxu0 %v1102
    %v1172 = vpop.f32.mrf.mxu0
    %v1173 = vadd.f32 0.0, %v1172
    %v1174 = vpop.f32.mrf.mxu0
    %v1175 = vpop.f32.mrf.mxu0
    %v1176 = vadd.f32 0.0, %v1175
    %v1177 = vpop.f32.mrf.mxu0
    %1178 = vmatprep.mubr.bf16.mxu0 0
    %1179 = vmatmul.mubr.bf16.gmra.mxu0 %v1103
    %v1180 = vpop.f32.mrf.mxu0
    %v1181 = vadd.f32 0.0, %v1180
    %v1182 = vpop.f32.mrf.mxu0
    %v1183 = vpop.f32.mrf.mxu0
    %v1184 = vadd.f32 0.0, %v1183
    %v1185 = vpop.f32.mrf.mxu0
    %1186 = vmatprep.mubr.bf16.mxu0 0
    %1187 = vmatmul.mubr.bf16.gmra.mxu0 %v1104
    %v1188 = vpop.f32.mrf.mxu0
    %v1189 = vadd.f32 0.0, %v1188
    %v1190 = vpop.f32.mrf.mxu0
    %v1191 = vpop.f32.mrf.mxu0
    %v1192 = vadd.f32 0.0, %v1191
    %v1193 = vpop.f32.mrf.mxu0
    %1194 = vmatprep.mubr.bf16.mxu0 0
    %1195 = vmatmul.mubr.bf16.gmra.mxu0 %v1105
    %v1196 = vpop.f32.mrf.mxu0
    %v1197 = vadd.f32 0.0, %v1196
    %v1198 = vpop.f32.mrf.mxu0
    %v1199 = vpop.f32.mrf.mxu0
    %v1200 = vadd.f32 0.0, %v1199
    %v1201 = vpop.f32.mrf.mxu0
    %1202 = vdwg.mxu0
    %v1203 = vrcp.pop %v1067
    %v1204 = vrcp.pop %v1069
    %v1205 = vrcp.pop %v1071
    %v1206 = vrcp.pop %v1073
    %v1207 = vrcp.pop %v1075
    %v1208 = vrcp.pop %v1077
    %v1209 = vrcp.pop %v1079
    %v1210 = vrcp.pop %v1081
    %v1211 = vrcp.pop %v1083
    %v1212 = vrcp.pop %v1085
    %v1213 = vrcp.pop %v1087
    %v1214 = vrcp.pop %v1089
    %v1215 = vrcp.pop %v1091
    %v1216 = vrcp.pop %v1093
    %v1217 = vrcp.pop %v1095
    %v1218 = vrcp.pop %v1097
    %v1219 = vmul.f32 %v1141, %v1203
    %v1220 = vmul.f32 %v1144, %v1204
    %v1221 = vmul.f32 %v1149, %v1205
    %v1222 = vmul.f32 %v1152, %v1206
    %v1223 = vmul.f32 %v1157, %v1207
    %v1224 = vmul.f32 %v1160, %v1208
    %v1225 = vmul.f32 %v1165, %v1209
    %v1226 = vmul.f32 %v1168, %v1210
    %v1227 = vmul.f32 %v1173, %v1211
    %v1228 = vmul.f32 %v1176, %v1212
    %v1229 = vmul.f32 %v1181, %v1213
    %v1230 = vmul.f32 %v1184, %v1214
    %v1231 = vmul.f32 %v1189, %v1215
    %v1232 = vmul.f32 %v1192, %v1216
    %v1233 = vmul.f32 %v1197, %v1217
    %v1234 = vmul.f32 %v1200, %v1218
    %1243 = vrot.lane.b32.xlu0 %v800, 64
    %v1244 = vpop.permute.xlu0 %1243
    %1245 = vrot.lane.b32.xlu0 %v801, 64
    %v1246 = vpop.permute.xlu0 %1245
    %1247 = vrot.lane.b32.xlu0 %v802, 64
    %v1248 = vpop.permute.xlu0 %1247
    %1249 = vrot.lane.b32.xlu0 %v803, 64
    %v1250 = vpop.permute.xlu0 %1249
    %1251 = vrot.lane.b32.xlu0 %v804, 64
    %v1252 = vpop.permute.xlu0 %1251
    %1253 = vrot.lane.b32.xlu0 %v805, 64
    %v1254 = vpop.permute.xlu0 %1253
    %1255 = vrot.lane.b32.xlu0 %v806, 64
    %v1256 = vpop.permute.xlu0 %1255
    %1257 = vrot.lane.b32.xlu0 %v807, 64
    %v1258 = vpop.permute.xlu0 %1257
    %1267 = vrot.lane.b32.xlu0 %v808, 64
    %v1268 = vpop.permute.xlu0 %1267
    %1269 = vrot.lane.b32.xlu0 %v809, 64
    %v1270 = vpop.permute.xlu0 %1269
    %1271 = vrot.lane.b32.xlu0 %v810, 64
    %v1272 = vpop.permute.xlu0 %1271
    %1273 = vrot.lane.b32.xlu0 %v811, 64
    %v1274 = vpop.permute.xlu0 %1273
    %1275 = vrot.lane.b32.xlu0 %v812, 64
    %v1276 = vpop.permute.xlu0 %1275
    %1277 = vrot.lane.b32.xlu0 %v813, 64
    %v1278 = vpop.permute.xlu0 %1277
    %1279 = vrot.lane.b32.xlu0 %v814, 64
    %v1280 = vpop.permute.xlu0 %1279
    %1281 = vrot.lane.b32.xlu0 %v815, 64
    %v1282 = vpop.permute.xlu0 %1281
    %v1284 = vsel %vm824, %v1244, 0
    %v1287 = vsel %vm824, %v1246, 0
    %v1290 = vsel %vm824, %v1248, 0
    %v1293 = vsel %vm824, %v1250, 0
    %v1296 = vsel %vm824, %v1252, 0
    %v1299 = vsel %vm824, %v1254, 0
    %v1302 = vsel %vm824, %v1256, 0
    %v1305 = vsel %vm824, %v1258, 0
    %v1308 = vsel %vm824, %v1268, 0
    %v1311 = vsel %vm824, %v1270, 0
    %v1314 = vsel %vm824, %v1272, 0
    %v1317 = vsel %vm824, %v1274, 0
    %v1320 = vsel %vm824, %v1276, 0
    %v1323 = vsel %vm824, %v1278, 0
    %v1326 = vsel %vm824, %v1280, 0
    %v1329 = vsel %vm824, %v1282, 0
    %1331 = vmatprep.subr.bf16.mxu0 0
    %1332 = vmatpush1.bf16.xpose.msra.mxu0 %v1329
    %1333 = vmatprep.subr.bf16.mxu0 0
    %1334 = vmatpush1.bf16.xpose.msra.mxu0 %v1326
    %1335 = vmatprep.subr.bf16.mxu0 0
    %1336 = vmatpush1.bf16.xpose.msra.mxu0 %v1323
    %1337 = vmatprep.subr.bf16.mxu0 0
    %1338 = vmatpush1.bf16.xpose.msra.mxu0 %v1320
    %1339 = vmatprep.subr.bf16.mxu0 0
    %1340 = vmatpush1.bf16.xpose.msra.mxu0 %v1317
    %1341 = vmatprep.subr.bf16.mxu0 0
    %1342 = vmatpush1.bf16.xpose.msra.mxu0 %v1314
    %1343 = vmatprep.subr.bf16.mxu0 0
    %1344 = vmatpush1.bf16.xpose.msra.mxu0 %v1311
    %1345 = vmatprep.subr.bf16.mxu0 0
    %1346 = vmatpush1.bf16.xpose.msra.mxu0 %v1308
    %1347 = vmatprep.subr.bf16.mxu0 0
    %1348 = vmatpush2.bf16.xpose.msra.mxu0 0
    %1349 = vmatprep.subr.bf16.mxu0 0
    %1350 = vmatpush2.bf16.xpose.msra.mxu0 0
    %1351 = vmatprep.subr.bf16.mxu0 0
    %1352 = vmatpush2.bf16.xpose.msra.mxu0 0
    %1353 = vmatprep.subr.bf16.mxu0 0
    %1354 = vmatpush2.bf16.xpose.msra.mxu0 0
    %1355 = vmatprep.subr.bf16.mxu0 0
    %1356 = vmatpush2.bf16.xpose.msra.mxu0 0
    %1357 = vmatprep.subr.bf16.mxu0 0
    %1358 = vmatpush2.bf16.xpose.msra.mxu0 0
    %1359 = vmatprep.subr.bf16.mxu0 0
    %1360 = vmatpush2.bf16.xpose.msra.mxu0 0
    %1361 = vmatprep.subr.bf16.mxu0 0
    %1362 = vmatpush2.bf16.xpose.msra.mxu0 0
    %1363 = vmatprep.mubr.bf16.mxu0 0
    %1364 = vmatmul.mubr.bf16.gmra.mxu0 %v1284
    %v1365 = vpop.f32.mrf.mxu0
    %v1366 = vadd.f32 0.0, %v1365
    %v1367 = vpop.f32.mrf.mxu0
    %v1368 = vpop.f32.mrf.mxu0
    %v1369 = vadd.f32 0.0, %v1368
    %v1370 = vpop.f32.mrf.mxu0
    %1371 = vmatprep.mubr.bf16.mxu0 0
    %1372 = vmatmul.mubr.bf16.gmra.mxu0 %v1287
    %v1373 = vpop.f32.mrf.mxu0
    %v1374 = vadd.f32 0.0, %v1373
    %v1375 = vpop.f32.mrf.mxu0
    %v1376 = vpop.f32.mrf.mxu0
    %v1377 = vadd.f32 0.0, %v1376
    %v1378 = vpop.f32.mrf.mxu0
    %1379 = vmatprep.mubr.bf16.mxu0 0
    %1380 = vmatmul.mubr.bf16.gmra.mxu0 %v1290
    %v1381 = vpop.f32.mrf.mxu0
    %v1382 = vadd.f32 0.0, %v1381
    %v1383 = vpop.f32.mrf.mxu0
    %v1384 = vpop.f32.mrf.mxu0
    %v1385 = vadd.f32 0.0, %v1384
    %v1386 = vpop.f32.mrf.mxu0
    %1387 = vmatprep.mubr.bf16.mxu0 0
    %1388 = vmatmul.mubr.bf16.gmra.mxu0 %v1293
    %v1389 = vpop.f32.mrf.mxu0
    %v1390 = vadd.f32 0.0, %v1389
    %v1391 = vpop.f32.mrf.mxu0
    %v1392 = vpop.f32.mrf.mxu0
    %v1393 = vadd.f32 0.0, %v1392
    %v1394 = vpop.f32.mrf.mxu0
    %1395 = vmatprep.mubr.bf16.mxu0 0
    %1396 = vmatmul.mubr.bf16.gmra.mxu0 %v1296
    %v1397 = vpop.f32.mrf.mxu0
    %v1398 = vadd.f32 0.0, %v1397
    %v1399 = vpop.f32.mrf.mxu0
    %v1400 = vpop.f32.mrf.mxu0
    %v1401 = vadd.f32 0.0, %v1400
    %v1402 = vpop.f32.mrf.mxu0
    %1403 = vmatprep.mubr.bf16.mxu0 0
    %1404 = vmatmul.mubr.bf16.gmra.mxu0 %v1299
    %v1405 = vpop.f32.mrf.mxu0
    %v1406 = vadd.f32 0.0, %v1405
    %v1407 = vpop.f32.mrf.mxu0
    %v1408 = vpop.f32.mrf.mxu0
    %v1409 = vadd.f32 0.0, %v1408
    %v1410 = vpop.f32.mrf.mxu0
    %1411 = vmatprep.mubr.bf16.mxu0 0
    %1412 = vmatmul.mubr.bf16.gmra.mxu0 %v1302
    %v1413 = vpop.f32.mrf.mxu0
    %v1414 = vadd.f32 0.0, %v1413
    %v1415 = vpop.f32.mrf.mxu0
    %v1416 = vpop.f32.mrf.mxu0
    %v1417 = vadd.f32 0.0, %v1416
    %v1418 = vpop.f32.mrf.mxu0
    %1419 = vmatprep.mubr.bf16.mxu0 0
    %1420 = vmatmul.mubr.bf16.gmra.mxu0 %v1305
    %v1421 = vpop.f32.mrf.mxu0
    %v1422 = vadd.f32 0.0, %v1421
    %v1423 = vpop.f32.mrf.mxu0
    %v1424 = vpop.f32.mrf.mxu0
    %v1425 = vadd.f32 0.0, %v1424
    %v1426 = vpop.f32.mrf.mxu0
    %1427 = vdwg.mxu0
    %v1428 = vtanh.pop %v1366
    %v1429 = vtanh.pop %v1369
    %v1430 = vtanh.pop %v1374
    %v1431 = vtanh.pop %v1377
    %v1432 = vtanh.pop %v1382
    %v1433 = vtanh.pop %v1385
    %v1434 = vtanh.pop %v1390
    %v1435 = vtanh.pop %v1393
    %v1436 = vtanh.pop %v1398
    %v1437 = vtanh.pop %v1401
    %v1438 = vtanh.pop %v1406
    %v1439 = vtanh.pop %v1409
    %v1440 = vtanh.pop %v1414
    %v1441 = vtanh.pop %v1417
    %v1442 = vtanh.pop %v1422
    %v1443 = vtanh.pop %v1425
    %v1444 = vmul.f32 %v1428, 50.0
    %v1445 = vmul.f32 %v1429, 50.0
    %v1446 = vmul.f32 %v1430, 50.0
    %v1447 = vmul.f32 %v1431, 50.0
    %v1448 = vmul.f32 %v1432, 50.0
    %v1449 = vmul.f32 %v1433, 50.0
    %v1450 = vmul.f32 %v1434, 50.0
    %v1451 = vmul.f32 %v1435, 50.0
    %v1452 = vmul.f32 %v1436, 50.0
    %v1453 = vmul.f32 %v1437, 50.0
    %v1454 = vmul.f32 %v1438, 50.0
    %v1455 = vmul.f32 %v1439, 50.0
    %v1456 = vmul.f32 %v1440, 50.0
    %v1457 = vmul.f32 %v1441, 50.0
    %v1458 = vmul.f32 %v1442, 50.0
    %v1459 = vmul.f32 %v1443, 50.0
    %v1460 = vadd.f32 %v1444, %v784
    %v1461 = vadd.f32 %v1445, %v785
    %v1462 = vadd.f32 %v1446, %v786
    %v1463 = vadd.f32 %v1447, %v787
    %v1464 = vadd.f32 %v1448, %v788
    %v1465 = vadd.f32 %v1449, %v789
    %v1466 = vadd.f32 %v1450, %v790
    %v1467 = vadd.f32 %v1451, %v791
    %v1468 = vadd.f32 %v1452, %v792
    %v1469 = vadd.f32 %v1453, %v793
    %v1470 = vadd.f32 %v1454, %v794
    %v1471 = vadd.f32 %v1455, %v795
    %v1472 = vadd.f32 %v1456, %v796
    %v1473 = vadd.f32 %v1457, %v797
    %v1474 = vadd.f32 %v1458, %v798
    %v1475 = vadd.f32 %v1459, %v799
    %v1476 = vsub.f32 %v1460, 50.0
    %v1477 = vsub.f32 %v1461, 50.0
    %v1478 = vsub.f32 %v1462, 50.0
    %v1479 = vsub.f32 %v1463, 50.0
    %v1480 = vsub.f32 %v1464, 50.0
    %v1481 = vsub.f32 %v1465, 50.0
    %v1482 = vsub.f32 %v1466, 50.0
    %v1483 = vsub.f32 %v1467, 50.0
    %v1484 = vsub.f32 %v1468, 50.0
    %v1485 = vsub.f32 %v1469, 50.0
    %v1486 = vsub.f32 %v1470, 50.0
    %v1487 = vsub.f32 %v1471, 50.0
    %v1488 = vsub.f32 %v1472, 50.0
    %v1489 = vsub.f32 %v1473, 50.0
    %v1490 = vsub.f32 %v1474, 50.0
    %v1491 = vsub.f32 %v1475, 50.0
    %v1492 = vmul.f32 %v1476, 1.442695
    %v1493 = vpow.pop %v1492
    %v1494 = vmul.f32 %v1477, 1.442695
    %v1495 = vpow.pop %v1494
    %v1496 = vmul.f32 %v1478, 1.442695
    %v1497 = vpow.pop %v1496
    %v1498 = vmul.f32 %v1479, 1.442695
    %v1499 = vpow.pop %v1498
    %v1500 = vmul.f32 %v1480, 1.442695
    %v1501 = vpow.pop %v1500
    %v1502 = vmul.f32 %v1481, 1.442695
    %v1503 = vpow.pop %v1502
    %v1504 = vmul.f32 %v1482, 1.442695
    %v1505 = vpow.pop %v1504
    %v1506 = vmul.f32 %v1483, 1.442695
    %v1507 = vpow.pop %v1506
    %v1508 = vmul.f32 %v1484, 1.442695
    %v1509 = vpow.pop %v1508
    %v1510 = vmul.f32 %v1485, 1.442695
    %v1511 = vpow.pop %v1510
    %v1512 = vmul.f32 %v1486, 1.442695
    %v1513 = vpow.pop %v1512
    %v1514 = vmul.f32 %v1487, 1.442695
    %v1515 = vpow.pop %v1514
    %v1516 = vmul.f32 %v1488, 1.442695
    %v1517 = vpow.pop %v1516
    %v1518 = vmul.f32 %v1489, 1.442695
    %v1519 = vpow.pop %v1518
    %v1520 = vmul.f32 %v1490, 1.442695
    %v1521 = vpow.pop %v1520
    %v1522 = vmul.f32 %v1491, 1.442695
    %v1523 = vpow.pop %v1522
    %1524 = vadd.xlane.f32.xlu0 %v1493
    %v1525 = vpop.xlane.xlu0 %1524
    %1526 = vadd.xlane.f32.xlu0 %v1495
    %v1527 = vpop.xlane.xlu0 %1526
    %1528 = vadd.xlane.f32.xlu0 %v1497
    %v1529 = vpop.xlane.xlu0 %1528
    %1530 = vadd.xlane.f32.xlu0 %v1499
    %v1531 = vpop.xlane.xlu0 %1530
    %1532 = vadd.xlane.f32.xlu0 %v1501
    %v1533 = vpop.xlane.xlu0 %1532
    %1534 = vadd.xlane.f32.xlu0 %v1503
    %v1535 = vpop.xlane.xlu0 %1534
    %1536 = vadd.xlane.f32.xlu0 %v1505
    %v1537 = vpop.xlane.xlu0 %1536
    %1538 = vadd.xlane.f32.xlu0 %v1507
    %v1539 = vpop.xlane.xlu0 %1538
    %1540 = vadd.xlane.f32.xlu0 %v1509
    %v1541 = vpop.xlane.xlu0 %1540
    %1542 = vadd.xlane.f32.xlu0 %v1511
    %v1543 = vpop.xlane.xlu0 %1542
    %1544 = vadd.xlane.f32.xlu0 %v1513
    %v1545 = vpop.xlane.xlu0 %1544
    %1546 = vadd.xlane.f32.xlu0 %v1515
    %v1547 = vpop.xlane.xlu0 %1546
    %1548 = vadd.xlane.f32.xlu0 %v1517
    %v1549 = vpop.xlane.xlu0 %1548
    %1550 = vadd.xlane.f32.xlu0 %v1519
    %v1551 = vpop.xlane.xlu0 %1550
    %1552 = vadd.xlane.f32.xlu0 %v1521
    %v1553 = vpop.xlane.xlu0 %1552
    %1554 = vadd.xlane.f32.xlu0 %v1523
    %v1555 = vpop.xlane.xlu0 %1554
    %v1556 = vpack.c.bf16 %v1495, %v1493
    %v1557 = vpack.c.bf16 %v1499, %v1497
    %v1558 = vpack.c.bf16 %v1503, %v1501
    %v1559 = vpack.c.bf16 %v1507, %v1505
    %v1560 = vpack.c.bf16 %v1511, %v1509
    %v1561 = vpack.c.bf16 %v1515, %v1513
    %v1562 = vpack.c.bf16 %v1519, %v1517
    %v1563 = vpack.c.bf16 %v1523, %v1521
    %1572 = vrot.lane.b32.xlu0 %v816, 64
    %v1573 = vpop.permute.xlu0 %1572
    %1574 = vrot.lane.b32.xlu0 %v817, 64
    %v1575 = vpop.permute.xlu0 %1574
    %1576 = vrot.lane.b32.xlu0 %v818, 64
    %v1577 = vpop.permute.xlu0 %1576
    %1578 = vrot.lane.b32.xlu0 %v819, 64
    %v1579 = vpop.permute.xlu0 %1578
    %1580 = vrot.lane.b32.xlu0 %v820, 64
    %v1581 = vpop.permute.xlu0 %1580
    %1582 = vrot.lane.b32.xlu0 %v821, 64
    %v1583 = vpop.permute.xlu0 %1582
    %1584 = vrot.lane.b32.xlu0 %v822, 64
    %v1585 = vpop.permute.xlu0 %1584
    %1586 = vrot.lane.b32.xlu0 %v823, 64
    %v1587 = vpop.permute.xlu0 %1586
    %1596 = vmatprep.subr.bf16.mxu0 0
    %1597 = vmatpush1.bf16.msra.mxu0 %v1587
    %1598 = vmatprep.subr.bf16.mxu0 0
    %1599 = vmatpush1.bf16.msra.mxu0 %v1585
    %1600 = vmatprep.subr.bf16.mxu0 0
    %1601 = vmatpush1.bf16.msra.mxu0 %v1583
    %1602 = vmatprep.subr.bf16.mxu0 0
    %1603 = vmatpush1.bf16.msra.mxu0 %v1581
    %1604 = vmatprep.subr.bf16.mxu0 0
    %1605 = vmatpush1.bf16.msra.mxu0 %v1579
    %1606 = vmatprep.subr.bf16.mxu0 0
    %1607 = vmatpush1.bf16.msra.mxu0 %v1577
    %1608 = vmatprep.subr.bf16.mxu0 0
    %1609 = vmatpush1.bf16.msra.mxu0 %v1575
    %1610 = vmatprep.subr.bf16.mxu0 0
    %1611 = vmatpush1.bf16.msra.mxu0 %v1573
    %1612 = vmatprep.subr.bf16.mxu0 0
    %1613 = vmatpush2.bf16.msra.mxu0 0
    %1614 = vmatprep.subr.bf16.mxu0 0
    %1615 = vmatpush2.bf16.msra.mxu0 0
    %1616 = vmatprep.subr.bf16.mxu0 0
    %1617 = vmatpush2.bf16.msra.mxu0 0
    %1618 = vmatprep.subr.bf16.mxu0 0
    %1619 = vmatpush2.bf16.msra.mxu0 0
    %1620 = vmatprep.subr.bf16.mxu0 0
    %1621 = vmatpush2.bf16.msra.mxu0 0
    %1622 = vmatprep.subr.bf16.mxu0 0
    %1623 = vmatpush2.bf16.msra.mxu0 0
    %1624 = vmatprep.subr.bf16.mxu0 0
    %1625 = vmatpush2.bf16.msra.mxu0 0
    %1626 = vmatprep.subr.bf16.mxu0 0
    %1627 = vmatpush2.bf16.msra.mxu0 0
    %1628 = vmatprep.mubr.bf16.mxu0 0
    %1629 = vmatmul.mubr.bf16.gmra.mxu0 %v1556
    %v1630 = vpop.f32.mrf.mxu0
    %v1631 = vadd.f32 0.0, %v1630
    %v1632 = vpop.f32.mrf.mxu0
    %v1633 = vpop.f32.mrf.mxu0
    %v1634 = vadd.f32 0.0, %v1633
    %v1635 = vpop.f32.mrf.mxu0
    %1636 = vmatprep.mubr.bf16.mxu0 0
    %1637 = vmatmul.mubr.bf16.gmra.mxu0 %v1557
    %v1638 = vpop.f32.mrf.mxu0
    %v1639 = vadd.f32 0.0, %v1638
    %v1640 = vpop.f32.mrf.mxu0
    %v1641 = vpop.f32.mrf.mxu0
    %v1642 = vadd.f32 0.0, %v1641
    %v1643 = vpop.f32.mrf.mxu0
    %1644 = vmatprep.mubr.bf16.mxu0 0
    %1645 = vmatmul.mubr.bf16.gmra.mxu0 %v1558
    %v1646 = vpop.f32.mrf.mxu0
    %v1647 = vadd.f32 0.0, %v1646
    %v1648 = vpop.f32.mrf.mxu0
    %v1649 = vpop.f32.mrf.mxu0
    %v1650 = vadd.f32 0.0, %v1649
    %v1651 = vpop.f32.mrf.mxu0
    %1652 = vmatprep.mubr.bf16.mxu0 0
    %1653 = vmatmul.mubr.bf16.gmra.mxu0 %v1559
    %v1654 = vpop.f32.mrf.mxu0
    %v1655 = vadd.f32 0.0, %v1654
    %v1656 = vpop.f32.mrf.mxu0
    %v1657 = vpop.f32.mrf.mxu0
    %v1658 = vadd.f32 0.0, %v1657
    %v1659 = vpop.f32.mrf.mxu0
    %1660 = vmatprep.mubr.bf16.mxu0 0
    %1661 = vmatmul.mubr.bf16.gmra.mxu0 %v1560
    %v1662 = vpop.f32.mrf.mxu0
    %v1663 = vadd.f32 0.0, %v1662
    %v1664 = vpop.f32.mrf.mxu0
    %v1665 = vpop.f32.mrf.mxu0
    %v1666 = vadd.f32 0.0, %v1665
    %v1667 = vpop.f32.mrf.mxu0
    %1668 = vmatprep.mubr.bf16.mxu0 0
    %1669 = vmatmul.mubr.bf16.gmra.mxu0 %v1561
    %v1670 = vpop.f32.mrf.mxu0
    %v1671 = vadd.f32 0.0, %v1670
    %v1672 = vpop.f32.mrf.mxu0
    %v1673 = vpop.f32.mrf.mxu0
    %v1674 = vadd.f32 0.0, %v1673
    %v1675 = vpop.f32.mrf.mxu0
    %1676 = vmatprep.mubr.bf16.mxu0 0
    %1677 = vmatmul.mubr.bf16.gmra.mxu0 %v1562
    %v1678 = vpop.f32.mrf.mxu0
    %v1679 = vadd.f32 0.0, %v1678
    %v1680 = vpop.f32.mrf.mxu0
    %v1681 = vpop.f32.mrf.mxu0
    %v1682 = vadd.f32 0.0, %v1681
    %v1683 = vpop.f32.mrf.mxu0
    %1684 = vmatprep.mubr.bf16.mxu0 0
    %1685 = vmatmul.mubr.bf16.gmra.mxu0 %v1563
    %v1686 = vpop.f32.mrf.mxu0
    %v1687 = vadd.f32 0.0, %v1686
    %v1688 = vpop.f32.mrf.mxu0
    %v1689 = vpop.f32.mrf.mxu0
    %v1690 = vadd.f32 0.0, %v1689
    %v1691 = vpop.f32.mrf.mxu0
    %1692 = vdwg.mxu0
    %v1693 = vrcp.pop %v1525
    %v1694 = vrcp.pop %v1527
    %v1695 = vrcp.pop %v1529
    %v1696 = vrcp.pop %v1531
    %v1697 = vrcp.pop %v1533
    %v1698 = vrcp.pop %v1535
    %v1699 = vrcp.pop %v1537
    %v1700 = vrcp.pop %v1539
    %v1701 = vrcp.pop %v1541
    %v1702 = vrcp.pop %v1543
    %v1703 = vrcp.pop %v1545
    %v1704 = vrcp.pop %v1547
    %v1705 = vrcp.pop %v1549
    %v1706 = vrcp.pop %v1551
    %v1707 = vrcp.pop %v1553
    %v1708 = vrcp.pop %v1555
    %v1709 = vmul.f32 %v1631, %v1693
    %v1710 = vmul.f32 %v1634, %v1694
    %v1711 = vmul.f32 %v1639, %v1695
    %v1712 = vmul.f32 %v1642, %v1696
    %v1713 = vmul.f32 %v1647, %v1697
    %v1714 = vmul.f32 %v1650, %v1698
    %v1715 = vmul.f32 %v1655, %v1699
    %v1716 = vmul.f32 %v1658, %v1700
    %v1717 = vmul.f32 %v1663, %v1701
    %v1718 = vmul.f32 %v1666, %v1702
    %v1719 = vmul.f32 %v1671, %v1703
    %v1720 = vmul.f32 %v1674, %v1704
    %v1721 = vmul.f32 %v1679, %v1705
    %v1722 = vmul.f32 %v1682, %v1706
    %v1723 = vmul.f32 %v1687, %v1707
    %v1724 = vmul.f32 %v1690, %v1708
    %1741 = vrot.lane.b32.xlu0 %v1709, 64
    %v1742 = vpop.permute.xlu0 %1741
    %1743 = vrot.lane.b32.xlu0 %v1710, 64
    %v1744 = vpop.permute.xlu0 %1743
    %1745 = vrot.lane.b32.xlu0 %v1711, 64
    %v1746 = vpop.permute.xlu0 %1745
    %1747 = vrot.lane.b32.xlu0 %v1712, 64
    %v1748 = vpop.permute.xlu0 %1747
    %1749 = vrot.lane.b32.xlu0 %v1713, 64
    %v1750 = vpop.permute.xlu0 %1749
    %1751 = vrot.lane.b32.xlu0 %v1714, 64
    %v1752 = vpop.permute.xlu0 %1751
    %1753 = vrot.lane.b32.xlu0 %v1715, 64
    %v1754 = vpop.permute.xlu0 %1753
    %1755 = vrot.lane.b32.xlu0 %v1716, 64
    %v1756 = vpop.permute.xlu0 %1755
    %1757 = vrot.lane.b32.xlu0 %v1717, 64
    %v1758 = vpop.permute.xlu0 %1757
    %1759 = vrot.lane.b32.xlu0 %v1718, 64
    %v1760 = vpop.permute.xlu0 %1759
    %1761 = vrot.lane.b32.xlu0 %v1719, 64
    %v1762 = vpop.permute.xlu0 %1761
    %1763 = vrot.lane.b32.xlu0 %v1720, 64
    %v1764 = vpop.permute.xlu0 %1763
    %1765 = vrot.lane.b32.xlu0 %v1721, 64
    %v1766 = vpop.permute.xlu0 %1765
    %1767 = vrot.lane.b32.xlu0 %v1722, 64
    %v1768 = vpop.permute.xlu0 %1767
    %1769 = vrot.lane.b32.xlu0 %v1723, 64
    %v1770 = vpop.permute.xlu0 %1769
    %1771 = vrot.lane.b32.xlu0 %v1724, 64
    %v1772 = vpop.permute.xlu0 %1771
    %v1789 = vsel %vm824, %v1219, %v1742
    %v1790 = vsel %vm824, %v1220, %v1744
    %v1791 = vsel %vm824, %v1221, %v1746
    %v1792 = vsel %vm824, %v1222, %v1748
    %v1793 = vsel %vm824, %v1223, %v1750
    %v1794 = vsel %vm824, %v1224, %v1752
    %v1795 = vsel %vm824, %v1225, %v1754
    %v1796 = vsel %vm824, %v1226, %v1756
    %v1797 = vsel %vm824, %v1227, %v1758
    %v1798 = vsel %vm824, %v1228, %v1760
    %v1799 = vsel %vm824, %v1229, %v1762
    %v1800 = vsel %vm824, %v1230, %v1764
    %v1801 = vsel %vm824, %v1231, %v1766
    %v1802 = vsel %vm824, %v1232, %v1768
    %v1803 = vsel %vm824, %v1233, %v1770
    %v1804 = vsel %vm824, %v1234, %v1772
    %v1805 = vpack.c.bf16 %v1790, %v1789
    %v1806 = vpack.c.bf16 %v1792, %v1791
    %v1807 = vpack.c.bf16 %v1794, %v1793
    %v1808 = vpack.c.bf16 %v1796, %v1795
    %v1809 = vpack.c.bf16 %v1798, %v1797
    %v1810 = vpack.c.bf16 %v1800, %v1799
    %v1811 = vpack.c.bf16 %v1802, %v1801
    %v1812 = vpack.c.bf16 %v1804, %v1803
    %v1813 = vld [vmem:[#allocation10] sm:$0xf]
    %v1814 = vld [vmem:[#allocation10 + $0x4] sm:$0xf]
    %v1815 = vld [vmem:[#allocation10 + $0x8] sm:$0xf]
    %v1816 = vld [vmem:[#allocation10 + $0xc] sm:$0xf]
    %v1817 = vld [vmem:[#allocation10 + $0x10] sm:$0xf]
    %v1818 = vld [vmem:[#allocation10 + $0x14] sm:$0xf]
    %v1819 = vld [vmem:[#allocation10 + $0x18] sm:$0xf]
    %v1820 = vld [vmem:[#allocation10 + $0x1c] sm:$0xf]
    %v1821 = vld [vmem:[#allocation10 + $0x20] sm:$0xf]
    %v1822 = vld [vmem:[#allocation10 + $0x24] sm:$0xf]
    %v1823 = vld [vmem:[#allocation10 + $0x28] sm:$0xf]
    %v1824 = vld [vmem:[#allocation10 + $0x2c] sm:$0xf]
    %v1825 = vld [vmem:[#allocation10 + $0x30] sm:$0xf]
    %v1826 = vld [vmem:[#allocation10 + $0x34] sm:$0xf]
    %v1827 = vld [vmem:[#allocation10 + $0x38] sm:$0xf]
    %v1828 = vld [vmem:[#allocation10 + $0x3c] sm:$0xf]
    %v1845 = vunpack.c.l.b16 %v1813
    %v1846 = vunpack.c.l.b16 %v1814
    %v1847 = vunpack.c.l.b16 %v1815
    %v1848 = vunpack.c.l.b16 %v1816
    %v1849 = vunpack.c.l.b16 %v1817
    %v1850 = vunpack.c.l.b16 %v1818
    %v1851 = vunpack.c.l.b16 %v1819
    %v1852 = vunpack.c.l.b16 %v1820
    %v1853 = vunpack.c.l.b16 %v1821
    %v1854 = vunpack.c.l.b16 %v1822
    %v1855 = vunpack.c.l.b16 %v1823
    %v1856 = vunpack.c.l.b16 %v1824
    %v1857 = vunpack.c.l.b16 %v1825
    %v1858 = vunpack.c.l.b16 %v1826
    %v1859 = vunpack.c.l.b16 %v1827
    %v1860 = vunpack.c.l.b16 %v1828
    %v1861 = vpack.c.b16 %v1846, %v1845
    %v1862 = vpack.c.b16 %v1848, %v1847
    %v1863 = vpack.c.b16 %v1850, %v1849
    %v1864 = vpack.c.b16 %v1852, %v1851
    %v1865 = vpack.c.b16 %v1854, %v1853
    %v1866 = vpack.c.b16 %v1856, %v1855
    %v1867 = vpack.c.b16 %v1858, %v1857
    %v1868 = vpack.c.b16 %v1860, %v1859
    %1877 = vmatprep.subr.bf16.mxu0 0
    %1878 = vmatpush1.bf16.msra.mxu0 %v1868
    %1879 = vmatprep.subr.bf16.mxu0 0
    %1880 = vmatpush1.bf16.msra.mxu0 %v1867
    %1881 = vmatprep.subr.bf16.mxu0 0
    %1882 = vmatpush1.bf16.msra.mxu0 %v1866
    %1883 = vmatprep.subr.bf16.mxu0 0
    %1884 = vmatpush1.bf16.msra.mxu0 %v1865
    %1885 = vmatprep.subr.bf16.mxu0 0
    %1886 = vmatpush1.bf16.msra.mxu0 %v1864
    %1887 = vmatprep.subr.bf16.mxu0 0
    %1888 = vmatpush1.bf16.msra.mxu0 %v1863
    %1889 = vmatprep.subr.bf16.mxu0 0
    %1890 = vmatpush1.bf16.msra.mxu0 %v1862
    %1891 = vmatprep.subr.bf16.mxu0 0
    %1892 = vmatpush1.bf16.msra.mxu0 %v1861
    %1893 = vmatprep.subr.bf16.mxu0 0
    %1894 = vmatpush2.bf16.msra.mxu0 0
    %1895 = vmatprep.subr.bf16.mxu0 0
    %1896 = vmatpush2.bf16.msra.mxu0 0
    %1897 = vmatprep.subr.bf16.mxu0 0
    %1898 = vmatpush2.bf16.msra.mxu0 0
    %1899 = vmatprep.subr.bf16.mxu0 0
    %1900 = vmatpush2.bf16.msra.mxu0 0
    %1901 = vmatprep.subr.bf16.mxu0 0
    %1902 = vmatpush2.bf16.msra.mxu0 0
    %1903 = vmatprep.subr.bf16.mxu0 0
    %1904 = vmatpush2.bf16.msra.mxu0 0
    %1905 = vmatprep.subr.bf16.mxu0 0
    %1906 = vmatpush2.bf16.msra.mxu0 0
    %1907 = vmatprep.subr.bf16.mxu0 0
    %1908 = vmatpush2.bf16.msra.mxu0 0
    %1909 = vmatprep.mubr.bf16.mxu0 0
    %1910 = vmatmul.mubr.bf16.gmra.mxu0 %v1805
    %v1911 = vpop.f32.mrf.mxu0
    %v1912 = vadd.f32 0.0, %v1911
    %v1913 = vpop.f32.mrf.mxu0
    %v1914 = vpop.f32.mrf.mxu0
    %v1915 = vadd.f32 0.0, %v1914
    %v1916 = vpop.f32.mrf.mxu0
    %1917 = vmatprep.mubr.bf16.mxu0 0
    %1918 = vmatmul.mubr.bf16.gmra.mxu0 %v1806
    %v1919 = vpop.f32.mrf.mxu0
    %v1920 = vadd.f32 0.0, %v1919
    %v1921 = vpop.f32.mrf.mxu0
    %v1922 = vpop.f32.mrf.mxu0
    %v1923 = vadd.f32 0.0, %v1922
    %v1924 = vpop.f32.mrf.mxu0
    %1925 = vmatprep.mubr.bf16.mxu0 0
    %1926 = vmatmul.mubr.bf16.gmra.mxu0 %v1807
    %v1927 = vpop.f32.mrf.mxu0
    %v1928 = vadd.f32 0.0, %v1927
    %v1929 = vpop.f32.mrf.mxu0
    %v1930 = vpop.f32.mrf.mxu0
    %v1931 = vadd.f32 0.0, %v1930
    %v1932 = vpop.f32.mrf.mxu0
    %1933 = vmatprep.mubr.bf16.mxu0 0
    %1934 = vmatmul.mubr.bf16.gmra.mxu0 %v1808
    %v1935 = vpop.f32.mrf.mxu0
    %v1936 = vadd.f32 0.0, %v1935
    %v1937 = vpop.f32.mrf.mxu0
    %v1938 = vpop.f32.mrf.mxu0
    %v1939 = vadd.f32 0.0, %v1938
    %v1940 = vpop.f32.mrf.mxu0
    %1941 = vdwg.mxu0
    %v1942 = vld [vmem:[#allocation11] sm:$0xf]
    %v1943 = vld [vmem:[#allocation11 + $0x4] sm:$0xf]
    %v1944 = vld [vmem:[#allocation11 + $0x8] sm:$0xf]
    %v1945 = vld [vmem:[#allocation11 + $0xc] sm:$0xf]
    %v1946 = vld [vmem:[#allocation11 + $0x10] sm:$0xf]
    %v1947 = vld [vmem:[#allocation11 + $0x14] sm:$0xf]
    %v1948 = vld [vmem:[#allocation11 + $0x18] sm:$0xf]
    %v1949 = vld [vmem:[#allocation11 + $0x1c] sm:$0xf]
    %v1950 = vld [vmem:[#allocation11 + $0x20] sm:$0xf]
    %v1951 = vld [vmem:[#allocation11 + $0x24] sm:$0xf]
    %v1952 = vld [vmem:[#allocation11 + $0x28] sm:$0xf]
    %v1953 = vld [vmem:[#allocation11 + $0x2c] sm:$0xf]
    %v1954 = vld [vmem:[#allocation11 + $0x30] sm:$0xf]
    %v1955 = vld [vmem:[#allocation11 + $0x34] sm:$0xf]
    %v1956 = vld [vmem:[#allocation11 + $0x38] sm:$0xf]
    %v1957 = vld [vmem:[#allocation11 + $0x3c] sm:$0xf]
    %v1974 = vunpack.c.l.b16 %v1942
    %v1975 = vunpack.c.l.b16 %v1943
    %v1976 = vunpack.c.l.b16 %v1944
    %v1977 = vunpack.c.l.b16 %v1945
    %v1978 = vunpack.c.l.b16 %v1946
    %v1979 = vunpack.c.l.b16 %v1947
    %v1980 = vunpack.c.l.b16 %v1948
    %v1981 = vunpack.c.l.b16 %v1949
    %v1982 = vunpack.c.l.b16 %v1950
    %v1983 = vunpack.c.l.b16 %v1951
    %v1984 = vunpack.c.l.b16 %v1952
    %v1985 = vunpack.c.l.b16 %v1953
    %v1986 = vunpack.c.l.b16 %v1954
    %v1987 = vunpack.c.l.b16 %v1955
    %v1988 = vunpack.c.l.b16 %v1956
    %v1989 = vunpack.c.l.b16 %v1957
    %v1990 = vpack.c.b16 %v1975, %v1974
    %v1991 = vpack.c.b16 %v1977, %v1976
    %v1992 = vpack.c.b16 %v1979, %v1978
    %v1993 = vpack.c.b16 %v1981, %v1980
    %v1994 = vpack.c.b16 %v1983, %v1982
    %v1995 = vpack.c.b16 %v1985, %v1984
    %v1996 = vpack.c.b16 %v1987, %v1986
    %v1997 = vpack.c.b16 %v1989, %v1988
    %2006 = vmatprep.subr.bf16.mxu0 0
    %2007 = vmatpush1.bf16.msra.mxu0 %v1997
    %2008 = vmatprep.subr.bf16.mxu0 0
    %2009 = vmatpush1.bf16.msra.mxu0 %v1996
    %2010 = vmatprep.subr.bf16.mxu0 0
    %2011 = vmatpush1.bf16.msra.mxu0 %v1995
    %2012 = vmatprep.subr.bf16.mxu0 0
    %2013 = vmatpush1.bf16.msra.mxu0 %v1994
    %2014 = vmatprep.subr.bf16.mxu0 0
    %2015 = vmatpush1.bf16.msra.mxu0 %v1993
    %2016 = vmatprep.subr.bf16.mxu0 0
    %2017 = vmatpush1.bf16.msra.mxu0 %v1992
    %2018 = vmatprep.subr.bf16.mxu0 0
    %2019 = vmatpush1.bf16.msra.mxu0 %v1991
    %2020 = vmatprep.subr.bf16.mxu0 0
    %2021 = vmatpush1.bf16.msra.mxu0 %v1990
    %2022 = vmatprep.subr.bf16.mxu0 0
    %2023 = vmatpush2.bf16.msra.mxu0 0
    %2024 = vmatprep.subr.bf16.mxu0 0
    %2025 = vmatpush2.bf16.msra.mxu0 0
    %2026 = vmatprep.subr.bf16.mxu0 0
    %2027 = vmatpush2.bf16.msra.mxu0 0
    %2028 = vmatprep.subr.bf16.mxu0 0
    %2029 = vmatpush2.bf16.msra.mxu0 0
    %2030 = vmatprep.subr.bf16.mxu0 0
    %2031 = vmatpush2.bf16.msra.mxu0 0
    %2032 = vmatprep.subr.bf16.mxu0 0
    %2033 = vmatpush2.bf16.msra.mxu0 0
    %2034 = vmatprep.subr.bf16.mxu0 0
    %2035 = vmatpush2.bf16.msra.mxu0 0
    %2036 = vmatprep.subr.bf16.mxu0 0
    %2037 = vmatpush2.bf16.msra.mxu0 0
    %2038 = vmatprep.mubr.bf16.mxu0 0
    %2039 = vmatmul.mubr.bf16.gmra.mxu0 %v1809
    %v2040 = vpop.f32.mrf.mxu0
    %v2041 = vadd.f32 0.0, %v2040
    %v2042 = vpop.f32.mrf.mxu0
    %v2043 = vpop.f32.mrf.mxu0
    %v2044 = vadd.f32 0.0, %v2043
    %v2045 = vpop.f32.mrf.mxu0
    %2046 = vmatprep.mubr.bf16.mxu0 0
    %2047 = vmatmul.mubr.bf16.gmra.mxu0 %v1810
    %v2048 = vpop.f32.mrf.mxu0
    %v2049 = vadd.f32 0.0, %v2048
    %v2050 = vpop.f32.mrf.mxu0
    %v2051 = vpop.f32.mrf.mxu0
    %v2052 = vadd.f32 0.0, %v2051
    %v2053 = vpop.f32.mrf.mxu0
    %2054 = vmatprep.mubr.bf16.mxu0 0
    %2055 = vmatmul.mubr.bf16.gmra.mxu0 %v1811
    %v2056 = vpop.f32.mrf.mxu0
    %v2057 = vadd.f32 0.0, %v2056
    %v2058 = vpop.f32.mrf.mxu0
    %v2059 = vpop.f32.mrf.mxu0
    %v2060 = vadd.f32 0.0, %v2059
    %v2061 = vpop.f32.mrf.mxu0
    %2062 = vmatprep.mubr.bf16.mxu0 0
    %2063 = vmatmul.mubr.bf16.gmra.mxu0 %v1812
    %v2064 = vpop.f32.mrf.mxu0
    %v2065 = vadd.f32 0.0, %v2064
    %v2066 = vpop.f32.mrf.mxu0
    %v2067 = vpop.f32.mrf.mxu0
    %v2068 = vadd.f32 0.0, %v2067
    %v2069 = vpop.f32.mrf.mxu0
    %2070 = vdwg.mxu0
    %2071 = vst [vmem:[#allocation13] sm:$0xff] %v1912
    %2072 = vst [vmem:[#allocation13 + $0x8] sm:$0xff] %v1915
    %2073 = vst [vmem:[#allocation13 + $0x10] sm:$0xff] %v1920
    %2074 = vst [vmem:[#allocation13 + $0x18] sm:$0xff] %v1923
    %2075 = vst [vmem:[#allocation13 + $0x20] sm:$0xff] %v1928
    %2076 = vst [vmem:[#allocation13 + $0x28] sm:$0xff] %v1931
    %2077 = vst [vmem:[#allocation13 + $0x30] sm:$0xff] %v1936
    %2078 = vst [vmem:[#allocation13 + $0x38] sm:$0xff] %v1939
    %2079 = vst [vmem:[#allocation13 + $0x40] sm:$0xff] %v2041
    %2080 = vst [vmem:[#allocation13 + $0x48] sm:$0xff] %v2044
    %2081 = vst [vmem:[#allocation13 + $0x50] sm:$0xff] %v2049
    %2082 = vst [vmem:[#allocation13 + $0x58] sm:$0xff] %v2052
    %2083 = vst [vmem:[#allocation13 + $0x60] sm:$0xff] %v2057
    %2084 = vst [vmem:[#allocation13 + $0x68] sm:$0xff] %v2060
    %2085 = vst [vmem:[#allocation13 + $0x70] sm:$0xff] %v2065
    %2086 = vst [vmem:[#allocation13 + $0x78] sm:$0xff] %v2068
    // Predicated region
    $region50: #{tpu_custom_call.1} parent=1 // pred_check
      _
    $region51: #{tpu_custom_call.1} parent=1 // pred_check_branch
      %2088 = sbr.rel (0) target = $region53
    $region52: #{tpu_custom_call.1} parent=1 // pred_region
      %s2090 = ssub.s32 2048, 2048
      %2091 = vsyncadd [#allocation4], %s2090
      %s2092 = sshll.u32 [#allocation13], 4
      %s2093 = int_to_ptr.vmem [resolvable:$true] %s2092
      %2098 = dma.vmem_to_hbm [thread:$0]  %s2093, 2048, %s6, [#allocation4], 128, 128, 8
    $region53: #{tpu_custom_call.1} parent=1 // pred_fallthru
      _
    // Predicated region
    $region54: #{tpu_custom_call.1} parent=1 // pred_check
      _
    $region55: #{tpu_custom_call.1} parent=1 // pred_check_branch
      %2100 = sbr.rel (0) target = $region57
    $region56: #{tpu_custom_call.1} parent=1 // pred_region
      %2101 = dma.done [#allocation4], 2048
    $region57: #{tpu_custom_call.1} parent=1 // pred_fallthru
      _
    %2102 = vsyncpa [#allocation3], 1
    %2103 = vsyncpa [#allocation6], 1
    %2104 = vsyncpa [#allocation9], 1
    %2105 = vsyncpa [#allocation12], 1
    %2106 = vsyncpa [#allocation4], 1

</llo_original>
